<compile_context>
chip_gen: v6e
topology: v6e:2x2x1
jax: 0.10.0
libtpu: 0.0.40
codegen_flags: <defaults>
</compile_context>

<pallas_src>
import jax
import jax.numpy as jnp
from jax.experimental import pallas as pl
from jax.experimental.pallas import tpu as pltpu

# ----------------------------- configuration --------------------------------
BATCH = 2
C_IN = 4
IMG = 16
HW = IMG * IMG
KSIZE = 3
KKC = KSIZE * KSIZE * C_IN          # 36
KKC_PAD = 128                       # lane-dense patch feature dim (zero padded)
FEAT_DIM = 128                      # stand-in for ResNet avg_pooling dim (2048)
HIDDEN = 128                        # stand-in for the MLP [1024, 1024] width
NUM_STAGES = 3                      # forward indexes 'stage_02' -> 3 stages
NUM_BETAS = 10
WRIST_DIM = 6                       # continuous 6D rotation representation
NUM_HAND_JOINTS = 15
HAND_POSE_DIM = NUM_HAND_JOINTS * 6
CAM_DIM = 3                         # scale + 2D translation (weak perspective)
PARAM_DIM = WRIST_DIM + HAND_POSE_DIM + NUM_BETAS + CAM_DIM   # 109
PARAM_PAD = 128                     # lane-dense padded parameter dim


# ----------------------------- fused Pallas kernel ---------------------------
def _hand_predictor_kernel(patches_ref, cw_ref, cb_ref, pm_ref,
                           w1f_ref, w1p_ref, b1_ref,
                           w2_ref, b2_ref, w3_ref, b3_ref,
                           feats_ref, params_ref, deltas_ref):
    """Fused backbone + iterative regressor (single invocation).

    Backbone: conv-as-matmul (im2col), bias + ReLU, per-image global average
    pool.  Regressor: NUM_STAGES unrolled refinement steps of
    concat([feat, params]) @ W1 (split into a hoisted feat term + params term),
    two-layer MLP, residual update of the running parameter estimate.
    Dropout in the reference MLP is a no-op in eval mode.
    """
    # ---- backbone: one (B*HW, KKC_PAD) @ (KKC_PAD, F) matmul, bf16 -> f32 acc
    y = jnp.dot(patches_ref[...], cw_ref[...],
                preferred_element_type=jnp.float32)
    y = jnp.maximum(y + cb_ref[...], 0.0)                        # bias + ReLU, f32

    # per-image global average pool (segmented mean over static row slices)
    feats = jnp.concatenate(
        [jnp.mean(y[b * HW:(b + 1) * HW, :], axis=0, keepdims=True)
         for b in range(BATCH)], axis=0)                         # (B, F) f32
    feats_ref[...] = feats

    # ---- iterative regression: hoist the stage-invariant first-layer term once
    h1f = (jnp.dot(feats.astype(jnp.bfloat16), w1f_ref[...],
                   preferred_element_type=jnp.float32) + b1_ref[...])   # (B, H) f32

    params = jnp.broadcast_to(pm_ref[...], (BATCH, PARAM_PAD))   # running estimate

    for s in range(NUM_STAGES):                                  # static unroll
        h1 = jnp.maximum(
            h1f + jnp.dot(params.astype(jnp.bfloat16), w1p_ref[...],
                          preferred_element_type=jnp.float32), 0.0)
        h2 = jnp.maximum(
            jnp.dot(h1.astype(jnp.bfloat16), w2_ref[...],
                    preferred_element_type=jnp.float32) + b2_ref[...], 0.0)
        delta = jnp.dot(h2.astype(jnp.bfloat16), w3_ref[...],
                        preferred_element_type=jnp.float32) + b3_ref[...]
        params = params + delta
        params_ref[s] = params
        deltas_ref[s] = delta


def hand_predictor_core(weights, patches):
    """patches: (B*HW, KKC_PAD) bf16.  Returns feats (B,F), params/deltas (S,B,109)."""
    BHW = patches.shape[0]
    F, H, P, S, B = FEAT_DIM, HIDDEN, PARAM_PAD, NUM_STAGES, BATCH

    feats, params_pad, deltas_pad = pl.pallas_call(
        _hand_predictor_kernel,
        out_shape=(jax.ShapeDtypeStruct((B, F), jnp.float32),
                   jax.ShapeDtypeStruct((S, B, P), jnp.float32),
                   jax.ShapeDtypeStruct((S, B, P), jnp.float32)),
        grid_spec=pltpu.PrefetchScalarGridSpec(
            num_scalar_prefetch=0,
            grid=(1,),                                            # single fused step
            in_specs=[
                pl.BlockSpec((BHW, KKC_PAD), lambda i: (0, 0)),   # patches
                pl.BlockSpec((KKC_PAD, F), lambda i: (0, 0)),     # conv_w
                pl.BlockSpec((1, F), lambda i: (0, 0)),           # conv_b
                pl.BlockSpec((1, P), lambda i: (0, 0)),           # param_mean (padded)
                pl.BlockSpec((F, H), lambda i: (0, 0)),           # w1f
                pl.BlockSpec((P, H), lambda i: (0, 0)),           # w1p (padded rows)
                pl.BlockSpec((1, H), lambda i: (0, 0)),           # b1
                pl.BlockSpec((H, H), lambda i: (0, 0)),           # w2
                pl.BlockSpec((1, H), lambda i: (0, 0)),           # b2
                pl.BlockSpec((H, P), lambda i: (0, 0)),           # w3 (padded cols)
                pl.BlockSpec((1, P), lambda i: (0, 0)),           # b3 (padded)
            ],
            out_specs=[
                pl.BlockSpec((B, F), lambda i: (0, 0)),           # features
                pl.BlockSpec((S, B, P), lambda i: (0, 0, 0)),     # per-stage params
                pl.BlockSpec((S, B, P), lambda i: (0, 0, 0)),     # per-stage deltas
            ],
        ),
        compiler_params=pltpu.CompilerParams(
            dimension_semantics=("arbitrary",)),
    )(patches, weights['conv_w'], weights['conv_b'], weights['param_mean_pad'],
      weights['w1f'], weights['w1p_pad'], weights['b1'],
      weights['w2'], weights['b2'], weights['w3_pad'], weights['b3_pad'])

    # slice the padded lanes back off (padded entries are exactly zero by construction)
    return feats, params_pad[:, :, :PARAM_DIM], deltas_pad[:, :, :PARAM_DIM]


# ----------------------------- JAX glue --------------------------------------
def im2col_padded(x_nhwc, k=KSIZE, kkc_pad=KKC_PAD):
    """3x3, stride 1, pad 1 patches -> (B*H*W, KKC_PAD) with zero lane padding."""
    B, H, W, C = x_nhwc.shape
    xp = jnp.pad(x_nhwc, ((0, 0), (1, 1), (1, 1), (0, 0)))
    cols = [xp[:, di:di + H, dj:dj + W, :] for di in range(k) for dj in range(k)]
    patches = jnp.stack(cols, axis=3).reshape(B, H * W, k * k * C)
    patches = jnp.pad(patches, ((0, 0), (0, 0), (0, kkc_pad - k * k * C)))
    return patches.reshape(B * H * W, kkc_pad)


def rot6d_to_rotmat(x, eps=1e-8):
    """Continuous 6D rotation repr -> rotation matrix (Gram-Schmidt, columns)."""
    m = x.reshape(-1, 3, 2)
    a1, a2 = m[:, :, 0], m[:, :, 1]
    b1 = a1 / jnp.maximum(jnp.linalg.norm(a1, axis=-1, keepdims=True), eps)
    b2 = a2 - jnp.sum(b1 * a2, axis=-1, keepdims=True) * b1
    b2 = b2 / jnp.maximum(jnp.linalg.norm(b2, axis=-1, keepdims=True), eps)
    b3 = jnp.cross(b1, b2)
    return jnp.stack([b1, b2, b3], axis=-1)                # (N, 3, 3)


def encode_rotmat(rotmats):
    """Rotation matrix -> 6D repr (first two columns); self-consistent with the
    rot6d decode above."""
    n = rotmats.shape[0]
    return rotmats[..., :, :2].reshape(n, -1)


def flip_rotmat(rotmats):
    """flip_pose(..., pose_format='rot-mat'): mirror rotation (F R F)."""
    f = jnp.diag(jnp.array([1.0, -1.0, -1.0], dtype=rotmats.dtype))
    return jnp.einsum('ij,njk,kl->nil', f, rotmats, f)


def init_weights(key):
    ks = jax.random.split(key, 6)
    wrist_mean = jnp.array([1., 0., 0., 1., 0., 0.], jnp.float32)          # identity 6D
    hand_mean = jnp.tile(wrist_mean, (NUM_HAND_JOINTS,))
    shape_mean = jnp.zeros((NUM_BETAS,), jnp.float32)
    camera_mean = jnp.array([0.9, 0.0, 0.0], jnp.float32)
    param_mean = jnp.concatenate(
        [wrist_mean, hand_mean, shape_mean, camera_mean]).reshape(1, PARAM_DIM)
    param_mean_pad = jnp.pad(param_mean, ((0, 0), (0, PARAM_PAD - PARAM_DIM)))

    conv_w = 0.05 * jax.random.normal(ks[0], (KKC, FEAT_DIM), jnp.float32)
    conv_w = jnp.pad(conv_w, ((0, KKC_PAD - KKC), (0, 0)))                 # zero K-pad

    w1p = 0.05 * jax.random.normal(ks[2], (PARAM_DIM, HIDDEN), jnp.float32)
    w1p_pad = jnp.pad(w1p, ((0, PARAM_PAD - PARAM_DIM), (0, 0)))           # padded params -> no effect

    w3 = 0.01 * jax.random.normal(ks[4], (HIDDEN, PARAM_DIM), jnp.float32)  # gain=0.01
    w3_pad = jnp.pad(w3, ((0, 0), (0, PARAM_PAD - PARAM_DIM)))             # padded deltas == 0

    return {
        # bf16 MXU operands (f32 accumulation inside the kernel)
        'conv_w': conv_w.astype(jnp.bfloat16),
        'w1f': (0.05 * jax.random.normal(ks[1], (FEAT_DIM, HIDDEN), jnp.float32)).astype(jnp.bfloat16),
        'w1p_pad': w1p_pad.astype(jnp.bfloat16),
        'w2': (0.05 * jax.random.normal(ks[3], (HIDDEN, HIDDEN), jnp.float32)).astype(jnp.bfloat16),
        'w3_pad': w3_pad.astype(jnp.bfloat16),
        # f32 elementwise operands
        'conv_b': jnp.zeros((1, FEAT_DIM), jnp.float32),
        'b1': jnp.zeros((1, HIDDEN), jnp.float32),
        'b2': jnp.zeros((1, HIDDEN), jnp.float32),
        'b3_pad': jnp.zeros((1, PARAM_PAD), jnp.float32),
        'param_mean_pad': param_mean_pad,
    }


def hand_predictor_forward(weights, hand_imgs_nchw, num_hand_imgs=0, parent_rots=None):
    B = hand_imgs_nchw.shape[0]
    num_body_data = B - num_hand_imgs
    dtype = hand_imgs_nchw.dtype
    if parent_rots is None:
        parent_rots = jnp.broadcast_to(jnp.eye(3, dtype=dtype)[None, None], (B, 1, 3, 3))

    # ---- fused Pallas kernel: backbone + 3-stage iterative regression ----
    x_nhwc = jnp.transpose(hand_imgs_nchw, (0, 2, 3, 1))
    patches = im2col_padded(x_nhwc).astype(jnp.bfloat16)
    feats, stage_params, stage_deltas = hand_predictor_core(weights, patches)

    right_idx = jnp.arange(0, num_body_data // 2)
    left_idx = jnp.arange(num_body_data // 2, num_body_data)
    pr_t = jnp.swapaxes(parent_rots.reshape(-1, 3, 3), 1, 2)

    model_parameters = []
    for s in range(NUM_STAGES):
        p = stage_params[s]
        wrist = p[:, :WRIST_DIM]
        hand = p[:, WRIST_DIM:WRIST_DIM + HAND_POSE_DIM]
        betas = p[:, WRIST_DIM + HAND_POSE_DIM:WRIST_DIM + HAND_POSE_DIM + NUM_BETAS]

        dec_wrist_abs = rot6d_to_rotmat(wrist).reshape(B, 3, 3)
        dec_wrist = jnp.matmul(pr_t, dec_wrist_abs)

        raw_right = raw_left = None
        if num_body_data // 2 > 0:
            raw_right = encode_rotmat(dec_wrist[right_idx]).reshape(num_body_data // 2, -1)
            left_flipped = flip_rotmat(dec_wrist[left_idx])
            raw_left = encode_rotmat(left_flipped).reshape(num_body_data // 2, -1)

        dec_hand = rot6d_to_rotmat(hand).reshape(B, NUM_HAND_JOINTS, 3, 3)
        model_parameters.append(dict(
            right_hand_pose=dec_hand, betas=betas, wrist_pose=dec_wrist_abs,
            hand_pose=dec_hand, raw_right_wrist_pose=raw_right,
            raw_left_wrist_pose=raw_left, raw_right_hand_pose=hand))

    # ---- camera parameters from last stage ----
    cam = stage_params[-1][:, WRIST_DIM + HAND_POSE_DIM + NUM_BETAS:]
    scale = jax.nn.softplus(cam[:, 0:1])          # camera_scale_func
    translation = cam[:, 1:3]

    # TODO(synk): MANO layer (LBS with the external MANO blend-shape asset) and the
    # weak-perspective projection of its joints (vertices / joints / proj_joints)
    # cannot be reproduced without the MANO model file; skipped.

    output = {
        'num_stages': NUM_STAGES,
        'features': feats,
        'camera_parameters': {'translation': translation, 'scale': scale},
        'deltas': stage_deltas,
    }
    for s in range(NUM_STAGES):
        output[f'stage_{s:02d}'] = model_parameters[s]
    return output


# ----------------------------- main -------------------------------------------
if __name__ == "__main__":
    key = jax.random.PRNGKey(0)
    k_w, k_x = jax.random.split(key)
    weights = init_weights(k_w)
    hand_imgs = jax.random.normal(k_x, (BATCH, C_IN, IMG, IMG), jnp.float32)  # NCHW input

    out = hand_predictor_forward(weights, hand_imgs)

    jax.block_until_ready(out['features'])
    jax.block_until_ready(out['stage_02']['hand_pose'])
    jax.block_until_ready(out['stage_02']['wrist_pose'])
    jax.block_until_ready(out['camera_parameters']['scale'])
    print("KERNEL_OK")
</pallas_src>

<mosaic_0001>
module attributes {stable_mosaic.version = 11 : i64} {
  func.func @_hand_predictor_kernel(%arg0: i32, %arg1: memref<512x128xbf16, #tpu.memory_space<vmem>>, %arg2: memref<128x128xbf16, #tpu.memory_space<vmem>>, %arg3: memref<1x128xf32, #tpu.memory_space<vmem>>, %arg4: memref<1x128xf32, #tpu.memory_space<vmem>>, %arg5: memref<128x128xbf16, #tpu.memory_space<vmem>>, %arg6: memref<128x128xbf16, #tpu.memory_space<vmem>>, %arg7: memref<1x128xf32, #tpu.memory_space<vmem>>, %arg8: memref<128x128xbf16, #tpu.memory_space<vmem>>, %arg9: memref<1x128xf32, #tpu.memory_space<vmem>>, %arg10: memref<128x128xbf16, #tpu.memory_space<vmem>>, %arg11: memref<1x128xf32, #tpu.memory_space<vmem>>, %arg12: memref<2x128xf32, #tpu.memory_space<vmem>>, %arg13: memref<3x2x128xf32, #tpu.memory_space<vmem>>, %arg14: memref<3x2x128xf32, #tpu.memory_space<vmem>>) attributes {dimension_semantics = [#tpu.dimension_semantics<arbitrary>], iteration_bounds = array<i64: 1>, scalar_prefetch = 0 : i64, scratch_operands = 0 : i64, tpu.core_type = #tpu.core_type<tc>, window_params = [{pipeline_mode = #tpu.pipeline_mode<synchronous>, transform_indices = @transform_0, window_bounds = array<i64: 512, 128>}, {pipeline_mode = #tpu.pipeline_mode<synchronous>, transform_indices = @transform_1, window_bounds = array<i64: 128, 128>}, {pipeline_mode = #tpu.pipeline_mode<synchronous>, transform_indices = @transform_2, window_bounds = array<i64: 1, 128>}, {pipeline_mode = #tpu.pipeline_mode<synchronous>, transform_indices = @transform_3, window_bounds = array<i64: 1, 128>}, {pipeline_mode = #tpu.pipeline_mode<synchronous>, transform_indices = @transform_4, window_bounds = array<i64: 128, 128>}, {pipeline_mode = #tpu.pipeline_mode<synchronous>, transform_indices = @transform_5, window_bounds = array<i64: 128, 128>}, {pipeline_mode = #tpu.pipeline_mode<synchronous>, transform_indices = @transform_6, window_bounds = array<i64: 1, 128>}, {pipeline_mode = #tpu.pipeline_mode<synchronous>, transform_indices = @transform_7, window_bounds = array<i64: 128, 128>}, {pipeline_mode = #tpu.pipeline_mode<synchronous>, transform_indices = @transform_8, window_bounds = array<i64: 1, 128>}, {pipeline_mode = #tpu.pipeline_mode<synchronous>, transform_indices = @transform_9, window_bounds = array<i64: 128, 128>}, {pipeline_mode = #tpu.pipeline_mode<synchronous>, transform_indices = @transform_10, window_bounds = array<i64: 1, 128>}, {pipeline_mode = #tpu.pipeline_mode<synchronous>, transform_indices = @transform_11, window_bounds = array<i64: 2, 128>}, {pipeline_mode = #tpu.pipeline_mode<synchronous>, transform_indices = @transform_12, window_bounds = array<i64: 3, 2, 128>}, {pipeline_mode = #tpu.pipeline_mode<synchronous>, transform_indices = @transform_13, window_bounds = array<i64: 3, 2, 128>}]} {
    %c0 = arith.constant 0 : index
    %c0_0 = arith.constant 0 : index
    %0 = vector.load %arg1[%c0, %c0_0] : memref<512x128xbf16, #tpu.memory_space<vmem>>, vector<512x128xbf16>
    %c0_1 = arith.constant 0 : index
    %c0_2 = arith.constant 0 : index
    %1 = vector.load %arg2[%c0_1, %c0_2] : memref<128x128xbf16, #tpu.memory_space<vmem>>, vector<128x128xbf16>
    %cst = arith.constant dense<0.000000e+00> : vector<512x128xf32>
    %2 = tpu.matmul %0, %1, %cst {dimension_numbers = #tpu.dot_dimension_numbers<[1], [0], [0], [1], [0, 0, 1, 1], [], []>} : vector<512x128xbf16>, vector<128x128xbf16>, vector<512x128xf32> -> vector<512x128xf32>
    %c0_3 = arith.constant 0 : index
    %c0_4 = arith.constant 0 : index
    %3 = vector.load %arg3[%c0_3, %c0_4] : memref<1x128xf32, #tpu.memory_space<vmem>>, vector<1x128xf32>
    %4 = vector.broadcast %3 : vector<1x128xf32> to vector<512x128xf32>
    %5 = arith.addf %2, %4 : vector<512x128xf32>
    %cst_5 = arith.constant 0.000000e+00 : f32
    %6 = vector.broadcast %cst_5 : f32 to vector<512x128xf32>
    %7 = arith.maximumf %5, %6 : vector<512x128xf32>
    %8 = vector.extract_strided_slice %7 {offsets = [0, 0], sizes = [256, 128], strides = [1, 1]} : vector<512x128xf32> to vector<256x128xf32>
    %cst_6 = arith.constant dense<0.000000e+00> : vector<128xf32>
    %9 = vector.multi_reduction <add>, %8, %cst_6 [0] : vector<256x128xf32> to vector<128xf32>
    %10 = vector.shape_cast %9 : vector<128xf32> to vector<1x128xf32>
    %cst_7 = arith.constant 2.560000e+02 : f32
    %11 = vector.broadcast %cst_7 : f32 to vector<1x128xf32>
    %12 = arith.divf %10, %11 : vector<1x128xf32>
    %13 = vector.extract_strided_slice %7 {offsets = [256, 0], sizes = [256, 128], strides = [1, 1]} : vector<512x128xf32> to vector<256x128xf32>
    %cst_8 = arith.constant dense<0.000000e+00> : vector<128xf32>
    %14 = vector.multi_reduction <add>, %13, %cst_8 [0] : vector<256x128xf32> to vector<128xf32>
    %15 = vector.shape_cast %14 : vector<128xf32> to vector<1x128xf32>
    %cst_9 = arith.constant 2.560000e+02 : f32
    %16 = vector.broadcast %cst_9 : f32 to vector<1x128xf32>
    %17 = arith.divf %15, %16 : vector<1x128xf32>
    %18 = tpu.concatenate %12, %17 in 0 : vector<1x128xf32>, vector<1x128xf32> -> vector<2x128xf32>
    %c0_10 = arith.constant 0 : index
    %c0_11 = arith.constant 0 : index
    %19 = vector.load %arg12[%c0_10, %c0_11] : memref<2x128xf32, #tpu.memory_space<vmem>>, vector<2x128xf32>
    tpu.vector_store %arg12[%c0_10, %c0_11], %18 {strides = array<i32>} : memref<2x128xf32, #tpu.memory_space<vmem>>, vector<2x128xf32>,
    %20 = arith.truncf %18 : vector<2x128xf32> to vector<2x128xbf16>
    %c0_12 = arith.constant 0 : index
    %c0_13 = arith.constant 0 : index
    %21 = vector.load %arg5[%c0_12, %c0_13] : memref<128x128xbf16, #tpu.memory_space<vmem>>, vector<128x128xbf16>
    %cst_14 = arith.constant dense<0.000000e+00> : vector<2x128xf32>
    %22 = tpu.matmul %20, %21, %cst_14 {dimension_numbers = #tpu.dot_dimension_numbers<[1], [0], [0], [1], [0, 0, 1, 1], [], []>} : vector<2x128xbf16>, vector<128x128xbf16>, vector<2x128xf32> -> vector<2x128xf32>
    %c0_15 = arith.constant 0 : index
    %c0_16 = arith.constant 0 : index
    %23 = vector.load %arg7[%c0_15, %c0_16] : memref<1x128xf32, #tpu.memory_space<vmem>>, vector<1x128xf32>
    %24 = vector.broadcast %23 : vector<1x128xf32> to vector<2x128xf32>
    %25 = arith.addf %22, %24 : vector<2x128xf32>
    %c0_17 = arith.constant 0 : index
    %c0_18 = arith.constant 0 : index
    %26 = vector.load %arg4[%c0_17, %c0_18] : memref<1x128xf32, #tpu.memory_space<vmem>>, vector<1x128xf32>
    %27 = vector.shape_cast %26 : vector<1x128xf32> to vector<1x128xf32>
    %28 = vector.broadcast %27 : vector<1x128xf32> to vector<2x128xf32>
    %29 = arith.truncf %28 : vector<2x128xf32> to vector<2x128xbf16>
    %c0_19 = arith.constant 0 : index
    %c0_20 = arith.constant 0 : index
    %30 = vector.load %arg6[%c0_19, %c0_20] : memref<128x128xbf16, #tpu.memory_space<vmem>>, vector<128x128xbf16>
    %cst_21 = arith.constant dense<0.000000e+00> : vector<2x128xf32>
    %31 = tpu.matmul %29, %30, %cst_21 {dimension_numbers = #tpu.dot_dimension_numbers<[1], [0], [0], [1], [0, 0, 1, 1], [], []>} : vector<2x128xbf16>, vector<128x128xbf16>, vector<2x128xf32> -> vector<2x128xf32>
    %32 = arith.addf %25, %31 : vector<2x128xf32>
    %cst_22 = arith.constant 0.000000e+00 : f32
    %33 = vector.broadcast %cst_22 : f32 to vector<2x128xf32>
    %34 = arith.maximumf %32, %33 : vector<2x128xf32>
    %35 = arith.truncf %34 : vector<2x128xf32> to vector<2x128xbf16>
    %c0_23 = arith.constant 0 : index
    %c0_24 = arith.constant 0 : index
    %36 = vector.load %arg8[%c0_23, %c0_24] : memref<128x128xbf16, #tpu.memory_space<vmem>>, vector<128x128xbf16>
    %cst_25 = arith.constant dense<0.000000e+00> : vector<2x128xf32>
    %37 = tpu.matmul %35, %36, %cst_25 {dimension_numbers = #tpu.dot_dimension_numbers<[1], [0], [0], [1], [0, 0, 1, 1], [], []>} : vector<2x128xbf16>, vector<128x128xbf16>, vector<2x128xf32> -> vector<2x128xf32>
    %c0_26 = arith.constant 0 : index
    %c0_27 = arith.constant 0 : index
    %38 = vector.load %arg9[%c0_26, %c0_27] : memref<1x128xf32, #tpu.memory_space<vmem>>, vector<1x128xf32>
    %39 = vector.broadcast %38 : vector<1x128xf32> to vector<2x128xf32>
    %40 = arith.addf %37, %39 : vector<2x128xf32>
    %cst_28 = arith.constant 0.000000e+00 : f32
    %41 = vector.broadcast %cst_28 : f32 to vector<2x128xf32>
    %42 = arith.maximumf %40, %41 : vector<2x128xf32>
    %43 = arith.truncf %42 : vector<2x128xf32> to vector<2x128xbf16>
    %c0_29 = arith.constant 0 : index
    %c0_30 = arith.constant 0 : index
    %44 = vector.load %arg10[%c0_29, %c0_30] : memref<128x128xbf16, #tpu.memory_space<vmem>>, vector<128x128xbf16>
    %cst_31 = arith.constant dense<0.000000e+00> : vector<2x128xf32>
    %45 = tpu.matmul %43, %44, %cst_31 {dimension_numbers = #tpu.dot_dimension_numbers<[1], [0], [0], [1], [0, 0, 1, 1], [], []>} : vector<2x128xbf16>, vector<128x128xbf16>, vector<2x128xf32> -> vector<2x128xf32>
    %c0_32 = arith.constant 0 : index
    %c0_33 = arith.constant 0 : index
    %46 = vector.load %arg11[%c0_32, %c0_33] : memref<1x128xf32, #tpu.memory_space<vmem>>, vector<1x128xf32>
    %47 = vector.broadcast %46 : vector<1x128xf32> to vector<2x128xf32>
    %48 = arith.addf %45, %47 : vector<2x128xf32>
    %49 = arith.addf %28, %48 : vector<2x128xf32>
    %c0_34 = arith.constant 0 : index
    %c0_35 = arith.constant 0 : index
    %c0_36 = arith.constant 0 : index
    %50 = vector.load %arg13[%c0_34, %c0_35, %c0_36] : memref<3x2x128xf32, #tpu.memory_space<vmem>>, vector<1x2x128xf32>
    %51 = vector.shape_cast %50 : vector<1x2x128xf32> to vector<2x128xf32>
    %52 = vector.shape_cast %49 : vector<2x128xf32> to vector<1x2x128xf32>
    tpu.vector_store %arg13[%c0_34, %c0_35, %c0_36], %52 {strides = array<i32>} : memref<3x2x128xf32, #tpu.memory_space<vmem>>, vector<1x2x128xf32>,
    %c0_37 = arith.constant 0 : index
    %c0_38 = arith.constant 0 : index
    %c0_39 = arith.constant 0 : index
    %53 = vector.load %arg14[%c0_37, %c0_38, %c0_39] : memref<3x2x128xf32, #tpu.memory_space<vmem>>, vector<1x2x128xf32>
    %54 = vector.shape_cast %53 : vector<1x2x128xf32> to vector<2x128xf32>
    %55 = vector.shape_cast %48 : vector<2x128xf32> to vector<1x2x128xf32>
    tpu.vector_store %arg14[%c0_37, %c0_38, %c0_39], %55 {strides = array<i32>} : memref<3x2x128xf32, #tpu.memory_space<vmem>>, vector<1x2x128xf32>,
    %56 = arith.truncf %49 : vector<2x128xf32> to vector<2x128xbf16>
    %c0_40 = arith.constant 0 : index
    %c0_41 = arith.constant 0 : index
    %57 = vector.load %arg6[%c0_40, %c0_41] : memref<128x128xbf16, #tpu.memory_space<vmem>>, vector<128x128xbf16>
    %cst_42 = arith.constant dense<0.000000e+00> : vector<2x128xf32>
    %58 = tpu.matmul %56, %57, %cst_42 {dimension_numbers = #tpu.dot_dimension_numbers<[1], [0], [0], [1], [0, 0, 1, 1], [], []>} : vector<2x128xbf16>, vector<128x128xbf16>, vector<2x128xf32> -> vector<2x128xf32>
    %59 = arith.addf %25, %58 : vector<2x128xf32>
    %cst_43 = arith.constant 0.000000e+00 : f32
    %60 = vector.broadcast %cst_43 : f32 to vector<2x128xf32>
    %61 = arith.maximumf %59, %60 : vector<2x128xf32>
    %62 = arith.truncf %61 : vector<2x128xf32> to vector<2x128xbf16>
    %c0_44 = arith.constant 0 : index
    %c0_45 = arith.constant 0 : index
    %63 = vector.load %arg8[%c0_44, %c0_45] : memref<128x128xbf16, #tpu.memory_space<vmem>>, vector<128x128xbf16>
    %cst_46 = arith.constant dense<0.000000e+00> : vector<2x128xf32>
    %64 = tpu.matmul %62, %63, %cst_46 {dimension_numbers = #tpu.dot_dimension_numbers<[1], [0], [0], [1], [0, 0, 1, 1], [], []>} : vector<2x128xbf16>, vector<128x128xbf16>, vector<2x128xf32> -> vector<2x128xf32>
    %c0_47 = arith.constant 0 : index
    %c0_48 = arith.constant 0 : index
    %65 = vector.load %arg9[%c0_47, %c0_48] : memref<1x128xf32, #tpu.memory_space<vmem>>, vector<1x128xf32>
    %66 = vector.broadcast %65 : vector<1x128xf32> to vector<2x128xf32>
    %67 = arith.addf %64, %66 : vector<2x128xf32>
    %cst_49 = arith.constant 0.000000e+00 : f32
    %68 = vector.broadcast %cst_49 : f32 to vector<2x128xf32>
    %69 = arith.maximumf %67, %68 : vector<2x128xf32>
    %70 = arith.truncf %69 : vector<2x128xf32> to vector<2x128xbf16>
    %c0_50 = arith.constant 0 : index
    %c0_51 = arith.constant 0 : index
    %71 = vector.load %arg10[%c0_50, %c0_51] : memref<128x128xbf16, #tpu.memory_space<vmem>>, vector<128x128xbf16>
    %cst_52 = arith.constant dense<0.000000e+00> : vector<2x128xf32>
    %72 = tpu.matmul %70, %71, %cst_52 {dimension_numbers = #tpu.dot_dimension_numbers<[1], [0], [0], [1], [0, 0, 1, 1], [], []>} : vector<2x128xbf16>, vector<128x128xbf16>, vector<2x128xf32> -> vector<2x128xf32>
    %c0_53 = arith.constant 0 : index
    %c0_54 = arith.constant 0 : index
    %73 = vector.load %arg11[%c0_53, %c0_54] : memref<1x128xf32, #tpu.memory_space<vmem>>, vector<1x128xf32>
    %74 = vector.broadcast %73 : vector<1x128xf32> to vector<2x128xf32>
    %75 = arith.addf %72, %74 : vector<2x128xf32>
    %76 = arith.addf %49, %75 : vector<2x128xf32>
    %c1 = arith.constant 1 : index
    %c0_55 = arith.constant 0 : index
    %c0_56 = arith.constant 0 : index
    %77 = vector.load %arg13[%c1, %c0_55, %c0_56] : memref<3x2x128xf32, #tpu.memory_space<vmem>>, vector<1x2x128xf32>
    %78 = vector.shape_cast %77 : vector<1x2x128xf32> to vector<2x128xf32>
    %79 = vector.shape_cast %76 : vector<2x128xf32> to vector<1x2x128xf32>
    tpu.vector_store %arg13[%c1, %c0_55, %c0_56], %79 {strides = array<i32>} : memref<3x2x128xf32, #tpu.memory_space<vmem>>, vector<1x2x128xf32>,
    %c1_57 = arith.constant 1 : index
    %c0_58 = arith.constant 0 : index
    %c0_59 = arith.constant 0 : index
    %80 = vector.load %arg14[%c1_57, %c0_58, %c0_59] : memref<3x2x128xf32, #tpu.memory_space<vmem>>, vector<1x2x128xf32>
    %81 = vector.shape_cast %80 : vector<1x2x128xf32> to vector<2x128xf32>
    %82 = vector.shape_cast %75 : vector<2x128xf32> to vector<1x2x128xf32>
    tpu.vector_store %arg14[%c1_57, %c0_58, %c0_59], %82 {strides = array<i32>} : memref<3x2x128xf32, #tpu.memory_space<vmem>>, vector<1x2x128xf32>,
    %83 = arith.truncf %76 : vector<2x128xf32> to vector<2x128xbf16>
    %c0_60 = arith.constant 0 : index
    %c0_61 = arith.constant 0 : index
    %84 = vector.load %arg6[%c0_60, %c0_61] : memref<128x128xbf16, #tpu.memory_space<vmem>>, vector<128x128xbf16>
    %cst_62 = arith.constant dense<0.000000e+00> : vector<2x128xf32>
    %85 = tpu.matmul %83, %84, %cst_62 {dimension_numbers = #tpu.dot_dimension_numbers<[1], [0], [0], [1], [0, 0, 1, 1], [], []>} : vector<2x128xbf16>, vector<128x128xbf16>, vector<2x128xf32> -> vector<2x128xf32>
    %86 = arith.addf %25, %85 : vector<2x128xf32>
    %cst_63 = arith.constant 0.000000e+00 : f32
    %87 = vector.broadcast %cst_63 : f32 to vector<2x128xf32>
    %88 = arith.maximumf %86, %87 : vector<2x128xf32>
    %89 = arith.truncf %88 : vector<2x128xf32> to vector<2x128xbf16>
    %c0_64 = arith.constant 0 : index
    %c0_65 = arith.constant 0 : index
    %90 = vector.load %arg8[%c0_64, %c0_65] : memref<128x128xbf16, #tpu.memory_space<vmem>>, vector<128x128xbf16>
    %cst_66 = arith.constant dense<0.000000e+00> : vector<2x128xf32>
    %91 = tpu.matmul %89, %90, %cst_66 {dimension_numbers = #tpu.dot_dimension_numbers<[1], [0], [0], [1], [0, 0, 1, 1], [], []>} : vector<2x128xbf16>, vector<128x128xbf16>, vector<2x128xf32> -> vector<2x128xf32>
    %c0_67 = arith.constant 0 : index
    %c0_68 = arith.constant 0 : index
    %92 = vector.load %arg9[%c0_67, %c0_68] : memref<1x128xf32, #tpu.memory_space<vmem>>, vector<1x128xf32>
    %93 = vector.broadcast %92 : vector<1x128xf32> to vector<2x128xf32>
    %94 = arith.addf %91, %93 : vector<2x128xf32>
    %cst_69 = arith.constant 0.000000e+00 : f32
    %95 = vector.broadcast %cst_69 : f32 to vector<2x128xf32>
    %96 = arith.maximumf %94, %95 : vector<2x128xf32>
    %97 = arith.truncf %96 : vector<2x128xf32> to vector<2x128xbf16>
    %c0_70 = arith.constant 0 : index
    %c0_71 = arith.constant 0 : index
    %98 = vector.load %arg10[%c0_70, %c0_71] : memref<128x128xbf16, #tpu.memory_space<vmem>>, vector<128x128xbf16>
    %cst_72 = arith.constant dense<0.000000e+00> : vector<2x128xf32>
    %99 = tpu.matmul %97, %98, %cst_72 {dimension_numbers = #tpu.dot_dimension_numbers<[1], [0], [0], [1], [0, 0, 1, 1], [], []>} : vector<2x128xbf16>, vector<128x128xbf16>, vector<2x128xf32> -> vector<2x128xf32>
    %c0_73 = arith.constant 0 : index
    %c0_74 = arith.constant 0 : index
    %100 = vector.load %arg11[%c0_73, %c0_74] : memref<1x128xf32, #tpu.memory_space<vmem>>, vector<1x128xf32>
    %101 = vector.broadcast %100 : vector<1x128xf32> to vector<2x128xf32>
    %102 = arith.addf %99, %101 : vector<2x128xf32>
    %103 = arith.addf %76, %102 : vector<2x128xf32>
    %c2 = arith.constant 2 : index
    %c0_75 = arith.constant 0 : index
    %c0_76 = arith.constant 0 : index
    %104 = vector.load %arg13[%c2, %c0_75, %c0_76] : memref<3x2x128xf32, #tpu.memory_space<vmem>>, vector<1x2x128xf32>
    %105 = vector.shape_cast %104 : vector<1x2x128xf32> to vector<2x128xf32>
    %106 = vector.shape_cast %103 : vector<2x128xf32> to vector<1x2x128xf32>
    tpu.vector_store %arg13[%c2, %c0_75, %c0_76], %106 {strides = array<i32>} : memref<3x2x128xf32, #tpu.memory_space<vmem>>, vector<1x2x128xf32>,
    %c2_77 = arith.constant 2 : index
    %c0_78 = arith.constant 0 : index
    %c0_79 = arith.constant 0 : index
    %107 = vector.load %arg14[%c2_77, %c0_78, %c0_79] : memref<3x2x128xf32, #tpu.memory_space<vmem>>, vector<1x2x128xf32>
    %108 = vector.shape_cast %107 : vector<1x2x128xf32> to vector<2x128xf32>
    %109 = vector.shape_cast %102 : vector<2x128xf32> to vector<1x2x128xf32>
    tpu.vector_store %arg14[%c2_77, %c0_78, %c0_79], %109 {strides = array<i32>} : memref<3x2x128xf32, #tpu.memory_space<vmem>>, vector<1x2x128xf32>,
    return
  }
  func.func @transform_0(%arg0: i32) -> (i32, i32) {
    %c0_i32 = arith.constant 0 : i32
    %c0_i32_0 = arith.constant 0 : i32
    %c0_i32_1 = arith.constant 0 : i32
    return %c0_i32, %c0_i32_0 : i32, i32
  }
  func.func @transform_1(%arg0: i32) -> (i32, i32) {
    %c0_i32 = arith.constant 0 : i32
    %c0_i32_0 = arith.constant 0 : i32
    %c0_i32_1 = arith.constant 0 : i32
    return %c0_i32, %c0_i32_0 : i32, i32
  }
  func.func @transform_2(%arg0: i32) -> (i32, i32) {
    %c0_i32 = arith.constant 0 : i32
    %c0_i32_0 = arith.constant 0 : i32
    %c0_i32_1 = arith.constant 0 : i32
    return %c0_i32, %c0_i32_0 : i32, i32
  }
  func.func @transform_3(%arg0: i32) -> (i32, i32) {
    %c0_i32 = arith.constant 0 : i32
    %c0_i32_0 = arith.constant 0 : i32
    %c0_i32_1 = arith.constant 0 : i32
    return %c0_i32, %c0_i32_0 : i32, i32
  }
  func.func @transform_4(%arg0: i32) -> (i32, i32) {
    %c0_i32 = arith.constant 0 : i32
    %c0_i32_0 = arith.constant 0 : i32
    %c0_i32_1 = arith.constant 0 : i32
    return %c0_i32, %c0_i32_0 : i32, i32
  }
  func.func @transform_5(%arg0: i32) -> (i32, i32) {
    %c0_i32 = arith.constant 0 : i32
    %c0_i32_0 = arith.constant 0 : i32
    %c0_i32_1 = arith.constant 0 : i32
    return %c0_i32, %c0_i32_0 : i32, i32
  }
  func.func @transform_6(%arg0: i32) -> (i32, i32) {
    %c0_i32 = arith.constant 0 : i32
    %c0_i32_0 = arith.constant 0 : i32
    %c0_i32_1 = arith.constant 0 : i32
    return %c0_i32, %c0_i32_0 : i32, i32
  }
  func.func @transform_7(%arg0: i32) -> (i32, i32) {
    %c0_i32 = arith.constant 0 : i32
    %c0_i32_0 = arith.constant 0 : i32
    %c0_i32_1 = arith.constant 0 : i32
    return %c0_i32, %c0_i32_0 : i32, i32
  }
  func.func @transform_8(%arg0: i32) -> (i32, i32) {
    %c0_i32 = arith.constant 0 : i32
    %c0_i32_0 = arith.constant 0 : i32
    %c0_i32_1 = arith.constant 0 : i32
    return %c0_i32, %c0_i32_0 : i32, i32
  }
  func.func @transform_9(%arg0: i32) -> (i32, i32) {
    %c0_i32 = arith.constant 0 : i32
    %c0_i32_0 = arith.constant 0 : i32
    %c0_i32_1 = arith.constant 0 : i32
    return %c0_i32, %c0_i32_0 : i32, i32
  }
  func.func @transform_10(%arg0: i32) -> (i32, i32) {
    %c0_i32 = arith.constant 0 : i32
    %c0_i32_0 = arith.constant 0 : i32
    %c0_i32_1 = arith.constant 0 : i32
    return %c0_i32, %c0_i32_0 : i32, i32
  }
  func.func @transform_11(%arg0: i32) -> (i32, i32) {
    %c0_i32 = arith.constant 0 : i32
    %c0_i32_0 = arith.constant 0 : i32
    %c0_i32_1 = arith.constant 0 : i32
    return %c0_i32, %c0_i32_0 : i32, i32
  }
  func.func @transform_12(%arg0: i32) -> (i32, i32, i32) {
    %c0_i32 = arith.constant 0 : i32
    %c0_i32_0 = arith.constant 0 : i32
    %c0_i32_1 = arith.constant 0 : i32
    %c0_i32_2 = arith.constant 0 : i32
    return %c0_i32, %c0_i32_0, %c0_i32_1 : i32, i32, i32
  }
  func.func @transform_13(%arg0: i32) -> (i32, i32, i32) {
    %c0_i32 = arith.constant 0 : i32
    %c0_i32_0 = arith.constant 0 : i32
    %c0_i32_1 = arith.constant 0 : i32
    %c0_i32_2 = arith.constant 0 : i32
    return %c0_i32, %c0_i32_0, %c0_i32_1 : i32, i32, i32
  }
}

</mosaic_0001>

<llo_original>
// kernel: tpu_custom_call.1
$region0: #{tpu_custom_call.1}
  #allocation0 [shape = 'u32[]', space=smem, size = 0x4, offset = 0x4, fixed_abs, tag = 'smem constant byte address 0x4 - core index']
  #allocation1 [shape = 'u32[144,128]{1,0:T(1,128)}', space=vmem, size = 0x12000, scoped, tag = 'internal scratch']
  %s0 = inlined_call_operand.hbm [shape: bf16[512,128], index: 0, kind: input, shape index: {}]
  %s1 = inlined_call_operand.hbm [shape: bf16[128,128], index: 1, kind: input, shape index: {}]
  %s2 = inlined_call_operand.vmem [shape: f32[1,128], index: 2, kind: input, shape index: {}]
  %s3 = inlined_call_operand.vmem [shape: f32[1,128], index: 3, kind: input, shape index: {}]
  %s4 = inlined_call_operand.hbm [shape: bf16[128,128], index: 4, kind: input, shape index: {}]
  %s5 = inlined_call_operand.hbm [shape: bf16[128,128], index: 5, kind: input, shape index: {}]
  %s6 = inlined_call_operand.vmem [shape: f32[1,128], index: 6, kind: input, shape index: {}]
  %s7 = inlined_call_operand.hbm [shape: bf16[128,128], index: 7, kind: input, shape index: {}]
  %s8 = inlined_call_operand.vmem [shape: f32[1,128], index: 8, kind: input, shape index: {}]
  %s9 = inlined_call_operand.hbm [shape: bf16[128,128], index: 9, kind: input, shape index: {}]
  %s10 = inlined_call_operand.vmem [shape: f32[1,128], index: 10, kind: input, shape index: {}]
  %s11 = inlined_call_operand.hbm [shape: f32[2,128], index: 11, kind: output, shape index: {0}]
  %s12 = inlined_call_operand.hbm [shape: f32[3,2,128], index: 12, kind: output, shape index: {1}]
  %s13 = inlined_call_operand.hbm [shape: f32[3,2,128], index: 13, kind: output, shape index: {2}]
  %14 = xla_tuple %s11, %s12, %s13
  %s15 = sld [smem:[#allocation0]]
  $region94: #{tpu_custom_call.1} parent=0
    _
  %s17 = ssub.s32 1, %s15
  %s18 = scalar_select 0, %s17, %s15
  $region1: #{tpu_custom_call.1} parent=0
    #allocation2 [shape = 'u8[131072]{0}', space=vmem, size = 0x20000, scoped, tag = 'input window, operand 0, single buffered']
    #allocation3 [shape = 's32[1]{0}', space=sflag, size = 0x4, scoped, tag = 'scoped memory for tpu_custom_call.1']
    #allocation4 [shape = 's32[1]{0}', space=sflag, size = 0x4, scoped, tag = 'scoped memory for tpu_custom_call.1']
    #allocation5 [shape = 'u8[32768]{0}', space=vmem, size = 0x8000, scoped, tag = 'input window, operand 1, single buffered']
    #allocation6 [shape = 's32[1]{0}', space=sflag, size = 0x4, scoped, tag = 'scoped memory for tpu_custom_call.1']
    #allocation7 [shape = 'u8[32768]{0}', space=vmem, size = 0x8000, scoped, tag = 'input window, operand 4, single buffered']
    #allocation8 [shape = 'u8[32768]{0}', space=vmem, size = 0x8000, scoped, tag = 'input window, operand 5, single buffered']
    #allocation9 [shape = 's32[1]{0}', space=sflag, size = 0x4, scoped, tag = 'scoped memory for tpu_custom_call.1']
    #allocation10 [shape = 'u8[32768]{0}', space=vmem, size = 0x8000, scoped, tag = 'input window, operand 7, single buffered']
    #allocation11 [shape = 'u8[32768]{0}', space=vmem, size = 0x8000, scoped, tag = 'input window, operand 9, single buffered']
    #allocation12 [shape = 's32[1]{0}', space=sflag, size = 0x4, scoped, tag = 'scoped memory for tpu_custom_call.1']
    #allocation13 [shape = 'u8[1024]{0}', space=vmem, size = 0x400, scoped, tag = 'output window, operand 0, single buffered']
    #allocation14 [shape = 'u8[3072]{0}', space=vmem, size = 0xc00, scoped, tag = 'output window, operand 1, single buffered']
    #allocation15 [shape = 's32[1]{0}', space=sflag, size = 0x4, scoped, tag = 'scoped memory for tpu_custom_call.1']
    #allocation16 [shape = 'u8[3072]{0}', space=vmem, size = 0xc00, scoped, tag = 'output window, operand 2, single buffered']
    %19 = vsyncpa [#allocation3], 0
    %20 = vsyncpa [#allocation6], 0
    %21 = vsyncpa [#allocation9], 0
    %22 = vsyncpa [#allocation12], 0
    %23 = vsyncpa [#allocation4], 0
    %24 = vsyncpa [#allocation15], 0
    // Predicated region
    $region2: #{tpu_custom_call.1} parent=1 // pred_check
      _
    $region3: #{tpu_custom_call.1} parent=1 // pred_check_branch
      %26 = sbr.rel (0) target = $region5
    $region4: #{tpu_custom_call.1} parent=1 // pred_region
      %s28 = ssub.s32 4096, 4096
      %29 = vsyncadd [#allocation3], %s28
      %s30 = sshll.u32 [#allocation2], 4
      %s31 = int_to_ptr.vmem [resolvable:$true] %s30
      %36 = dma.hbm_to_vmem [thread:$0]  %s0, 4096, %s31, [#allocation3], 64, 64, 4
    $region5: #{tpu_custom_call.1} parent=1 // pred_fallthru
      _
    // Predicated region
    $region6: #{tpu_custom_call.1} parent=1 // pred_check
      _
    $region7: #{tpu_custom_call.1} parent=1 // pred_check_branch
      %38 = sbr.rel (0) target = $region9
    $region8: #{tpu_custom_call.1} parent=1 // pred_region
      %s40 = ssub.s32 1024, 1024
      %41 = vsyncadd [#allocation6], %s40
      %s42 = sshll.u32 [#allocation5], 4
      %s43 = int_to_ptr.vmem [resolvable:$true] %s42
      %48 = dma.hbm_to_vmem [thread:$0]  %s1, 1024, %s43, [#allocation6], 64, 64, 4
    $region9: #{tpu_custom_call.1} parent=1 // pred_fallthru
      _
    // Predicated region
    $region10: #{tpu_custom_call.1} parent=1 // pred_check
      _
    $region11: #{tpu_custom_call.1} parent=1 // pred_check_branch
      %50 = sbr.rel (0) target = $region13
    $region12: #{tpu_custom_call.1} parent=1 // pred_region
      _
    $region13: #{tpu_custom_call.1} parent=1 // pred_fallthru
      _
    // Predicated region
    $region14: #{tpu_custom_call.1} parent=1 // pred_check
      _
    $region15: #{tpu_custom_call.1} parent=1 // pred_check_branch
      %52 = sbr.rel (0) target = $region17
    $region16: #{tpu_custom_call.1} parent=1 // pred_region
      _
    $region17: #{tpu_custom_call.1} parent=1 // pred_fallthru
      _
    // Predicated region
    $region18: #{tpu_custom_call.1} parent=1 // pred_check
      _
    $region19: #{tpu_custom_call.1} parent=1 // pred_check_branch
      %54 = sbr.rel (0) target = $region21
    $region20: #{tpu_custom_call.1} parent=1 // pred_region
      %s56 = ssub.s32 1024, 1024
      %57 = vsyncadd [#allocation6], %s56
      %s58 = sshll.u32 [#allocation7], 4
      %s59 = int_to_ptr.vmem [resolvable:$true] %s58
      %64 = dma.hbm_to_vmem [thread:$0]  %s4, 1024, %s59, [#allocation6], 64, 64, 4
    $region21: #{tpu_custom_call.1} parent=1 // pred_fallthru
      _
    // Predicated region
    $region22: #{tpu_custom_call.1} parent=1 // pred_check
      _
    $region23: #{tpu_custom_call.1} parent=1 // pred_check_branch
      %66 = sbr.rel (0) target = $region25
    $region24: #{tpu_custom_call.1} parent=1 // pred_region
      %s68 = ssub.s32 1024, 1024
      %69 = vsyncadd [#allocation9], %s68
      %s70 = sshll.u32 [#allocation8], 4
      %s71 = int_to_ptr.vmem [resolvable:$true] %s70
      %76 = dma.hbm_to_vmem [thread:$0]  %s5, 1024, %s71, [#allocation9], 64, 64, 4
    $region25: #{tpu_custom_call.1} parent=1 // pred_fallthru
      _
    // Predicated region
    $region26: #{tpu_custom_call.1} parent=1 // pred_check
      _
    $region27: #{tpu_custom_call.1} parent=1 // pred_check_branch
      %78 = sbr.rel (0) target = $region29
    $region28: #{tpu_custom_call.1} parent=1 // pred_region
      _
    $region29: #{tpu_custom_call.1} parent=1 // pred_fallthru
      _
    // Predicated region
    $region30: #{tpu_custom_call.1} parent=1 // pred_check
      _
    $region31: #{tpu_custom_call.1} parent=1 // pred_check_branch
      %80 = sbr.rel (0) target = $region33
    $region32: #{tpu_custom_call.1} parent=1 // pred_region
      %s82 = ssub.s32 1024, 1024
      %83 = vsyncadd [#allocation9], %s82
      %s84 = sshll.u32 [#allocation10], 4
      %s85 = int_to_ptr.vmem [resolvable:$true] %s84
      %90 = dma.hbm_to_vmem [thread:$0]  %s7, 1024, %s85, [#allocation9], 64, 64, 4
    $region33: #{tpu_custom_call.1} parent=1 // pred_fallthru
      _
    // Predicated region
    $region34: #{tpu_custom_call.1} parent=1 // pred_check
      _
    $region35: #{tpu_custom_call.1} parent=1 // pred_check_branch
      %92 = sbr.rel (0) target = $region37
    $region36: #{tpu_custom_call.1} parent=1 // pred_region
      _
    $region37: #{tpu_custom_call.1} parent=1 // pred_fallthru
      _
    // Predicated region
    $region38: #{tpu_custom_call.1} parent=1 // pred_check
      _
    $region39: #{tpu_custom_call.1} parent=1 // pred_check_branch
      %94 = sbr.rel (0) target = $region41
    $region40: #{tpu_custom_call.1} parent=1 // pred_region
      %s96 = ssub.s32 1024, 1024
      %97 = vsyncadd [#allocation12], %s96
      %s98 = sshll.u32 [#allocation11], 4
      %s99 = int_to_ptr.vmem [resolvable:$true] %s98
      %104 = dma.hbm_to_vmem [thread:$0]  %s9, 1024, %s99, [#allocation12], 64, 64, 4
    $region41: #{tpu_custom_call.1} parent=1 // pred_fallthru
      _
    // Predicated region
    $region42: #{tpu_custom_call.1} parent=1 // pred_check
      _
    $region43: #{tpu_custom_call.1} parent=1 // pred_check_branch
      %106 = sbr.rel (0) target = $region45
    $region44: #{tpu_custom_call.1} parent=1 // pred_region
      _
    $region45: #{tpu_custom_call.1} parent=1 // pred_fallthru
      _
    // Predicated region
    $region46: #{tpu_custom_call.1} parent=1 // pred_check
      _
    $region47: #{tpu_custom_call.1} parent=1 // pred_check_branch
      %108 = sbr.rel (0) target = $region49
    $region48: #{tpu_custom_call.1} parent=1 // pred_region
      %109 = dma.done [#allocation3], 4096
    $region49: #{tpu_custom_call.1} parent=1 // pred_fallthru
      _
    // Predicated region
    $region50: #{tpu_custom_call.1} parent=1 // pred_check
      _
    $region51: #{tpu_custom_call.1} parent=1 // pred_check_branch
      %111 = sbr.rel (0) target = $region53
    $region52: #{tpu_custom_call.1} parent=1 // pred_region
      %112 = dma.done [#allocation6], 1024
    $region53: #{tpu_custom_call.1} parent=1 // pred_fallthru
      _
    // Predicated region
    $region54: #{tpu_custom_call.1} parent=1 // pred_check
      _
    $region55: #{tpu_custom_call.1} parent=1 // pred_check_branch
      %114 = sbr.rel (0) target = $region57
    $region56: #{tpu_custom_call.1} parent=1 // pred_region
      %115 = dma.done [#allocation6], 1024
    $region57: #{tpu_custom_call.1} parent=1 // pred_fallthru
      _
    // Predicated region
    $region58: #{tpu_custom_call.1} parent=1 // pred_check
      _
    $region59: #{tpu_custom_call.1} parent=1 // pred_check_branch
      %117 = sbr.rel (0) target = $region61
    $region60: #{tpu_custom_call.1} parent=1 // pred_region
      %118 = dma.done [#allocation9], 1024
    $region61: #{tpu_custom_call.1} parent=1 // pred_fallthru
      _
    // Predicated region
    $region62: #{tpu_custom_call.1} parent=1 // pred_check
      _
    $region63: #{tpu_custom_call.1} parent=1 // pred_check_branch
      %120 = sbr.rel (0) target = $region65
    $region64: #{tpu_custom_call.1} parent=1 // pred_region
      %121 = dma.done [#allocation9], 1024
    $region65: #{tpu_custom_call.1} parent=1 // pred_fallthru
      _
    // Predicated region
    $region66: #{tpu_custom_call.1} parent=1 // pred_check
      _
    $region67: #{tpu_custom_call.1} parent=1 // pred_check_branch
      %123 = sbr.rel (0) target = $region69
    $region68: #{tpu_custom_call.1} parent=1 // pred_region
      %124 = dma.done [#allocation12], 1024
    $region69: #{tpu_custom_call.1} parent=1 // pred_fallthru
      _
    %v126 = vld [vmem:[#allocation2] sm:$0xf]
    %v127 = vld [vmem:[#allocation2 + $0x4] sm:$0xf]
    %v128 = vld [vmem:[#allocation2 + $0x8] sm:$0xf]
    %v129 = vld [vmem:[#allocation2 + $0xc] sm:$0xf]
    %v130 = vld [vmem:[#allocation2 + $0x10] sm:$0xf]
    %v131 = vld [vmem:[#allocation2 + $0x14] sm:$0xf]
    %v132 = vld [vmem:[#allocation2 + $0x18] sm:$0xf]
    %v133 = vld [vmem:[#allocation2 + $0x1c] sm:$0xf]
    %v134 = vld [vmem:[#allocation2 + $0x20] sm:$0xf]
    %v135 = vld [vmem:[#allocation2 + $0x24] sm:$0xf]
    %v136 = vld [vmem:[#allocation2 + $0x28] sm:$0xf]
    %v137 = vld [vmem:[#allocation2 + $0x2c] sm:$0xf]
    %v138 = vld [vmem:[#allocation2 + $0x30] sm:$0xf]
    %v139 = vld [vmem:[#allocation2 + $0x34] sm:$0xf]
    %v140 = vld [vmem:[#allocation2 + $0x38] sm:$0xf]
    %v141 = vld [vmem:[#allocation2 + $0x3c] sm:$0xf]
    %v142 = vld [vmem:[#allocation2 + $0x40] sm:$0xf]
    %v143 = vld [vmem:[#allocation2 + $0x44] sm:$0xf]
    %v144 = vld [vmem:[#allocation2 + $0x48] sm:$0xf]
    %v145 = vld [vmem:[#allocation2 + $0x4c] sm:$0xf]
    %v146 = vld [vmem:[#allocation2 + $0x50] sm:$0xf]
    %v147 = vld [vmem:[#allocation2 + $0x54] sm:$0xf]
    %v148 = vld [vmem:[#allocation2 + $0x58] sm:$0xf]
    %v149 = vld [vmem:[#allocation2 + $0x5c] sm:$0xf]
    %v150 = vld [vmem:[#allocation2 + $0x60] sm:$0xf]
    %v151 = vld [vmem:[#allocation2 + $0x64] sm:$0xf]
    %v152 = vld [vmem:[#allocation2 + $0x68] sm:$0xf]
    %v153 = vld [vmem:[#allocation2 + $0x6c] sm:$0xf]
    %v154 = vld [vmem:[#allocation2 + $0x70] sm:$0xf]
    %v155 = vld [vmem:[#allocation2 + $0x74] sm:$0xf]
    %v156 = vld [vmem:[#allocation2 + $0x78] sm:$0xf]
    %v157 = vld [vmem:[#allocation2 + $0x7c] sm:$0xf]
    %v158 = vld [vmem:[#allocation2 + $0x80] sm:$0xf]
    %v159 = vld [vmem:[#allocation2 + $0x84] sm:$0xf]
    %v160 = vld [vmem:[#allocation2 + $0x88] sm:$0xf]
    %v161 = vld [vmem:[#allocation2 + $0x8c] sm:$0xf]
    %v162 = vld [vmem:[#allocation2 + $0x90] sm:$0xf]
    %v163 = vld [vmem:[#allocation2 + $0x94] sm:$0xf]
    %v164 = vld [vmem:[#allocation2 + $0x98] sm:$0xf]
    %v165 = vld [vmem:[#allocation2 + $0x9c] sm:$0xf]
    %v166 = vld [vmem:[#allocation2 + $0xa0] sm:$0xf]
    %v167 = vld [vmem:[#allocation2 + $0xa4] sm:$0xf]
    %v168 = vld [vmem:[#allocation2 + $0xa8] sm:$0xf]
    %v169 = vld [vmem:[#allocation2 + $0xac] sm:$0xf]
    %v170 = vld [vmem:[#allocation2 + $0xb0] sm:$0xf]
    %v171 = vld [vmem:[#allocation2 + $0xb4] sm:$0xf]
    %v172 = vld [vmem:[#allocation2 + $0xb8] sm:$0xf]
    %v173 = vld [vmem:[#allocation2 + $0xbc] sm:$0xf]
    %v174 = vld [vmem:[#allocation2 + $0xc0] sm:$0xf]
    %v175 = vld [vmem:[#allocation2 + $0xc4] sm:$0xf]
    %v176 = vld [vmem:[#allocation2 + $0xc8] sm:$0xf]
    %v177 = vld [vmem:[#allocation2 + $0xcc] sm:$0xf]
    %v178 = vld [vmem:[#allocation2 + $0xd0] sm:$0xf]
    %v179 = vld [vmem:[#allocation2 + $0xd4] sm:$0xf]
    %v180 = vld [vmem:[#allocation2 + $0xd8] sm:$0xf]
    %v181 = vld [vmem:[#allocation2 + $0xdc] sm:$0xf]
    %v182 = vld [vmem:[#allocation2 + $0xe0] sm:$0xf]
    %v183 = vld [vmem:[#allocation2 + $0xe4] sm:$0xf]
    %v184 = vld [vmem:[#allocation2 + $0xe8] sm:$0xf]
    %v185 = vld [vmem:[#allocation2 + $0xec] sm:$0xf]
    %v186 = vld [vmem:[#allocation2 + $0xf0] sm:$0xf]
    %v187 = vld [vmem:[#allocation2 + $0xf4] sm:$0xf]
    %v188 = vld [vmem:[#allocation2 + $0xf8] sm:$0xf]
    %v189 = vld [vmem:[#allocation2 + $0xfc] sm:$0xf]
    %v190 = vld [vmem:[#allocation5] sm:$0xf]
    %v191 = vld [vmem:[#allocation5 + $0x4] sm:$0xf]
    %v192 = vld [vmem:[#allocation5 + $0x8] sm:$0xf]
    %v193 = vld [vmem:[#allocation5 + $0xc] sm:$0xf]
    %v194 = vld [vmem:[#allocation5 + $0x10] sm:$0xf]
    %v195 = vld [vmem:[#allocation5 + $0x14] sm:$0xf]
    %v196 = vld [vmem:[#allocation5 + $0x18] sm:$0xf]
    %v197 = vld [vmem:[#allocation5 + $0x1c] sm:$0xf]
    %v198 = vld [vmem:[#allocation5 + $0x20] sm:$0xf]
    %v199 = vld [vmem:[#allocation5 + $0x24] sm:$0xf]
    %v200 = vld [vmem:[#allocation5 + $0x28] sm:$0xf]
    %v201 = vld [vmem:[#allocation5 + $0x2c] sm:$0xf]
    %v202 = vld [vmem:[#allocation5 + $0x30] sm:$0xf]
    %v203 = vld [vmem:[#allocation5 + $0x34] sm:$0xf]
    %v204 = vld [vmem:[#allocation5 + $0x38] sm:$0xf]
    %v205 = vld [vmem:[#allocation5 + $0x3c] sm:$0xf]
    %v206 = vld [vmem:[%s2] sm:$0x1]
    %v208 = vlaneseq
    %v209 = vshrl.u32 %v208, 7
    %v210 = vsub.s32 0, %v209
    %v211 = vrot.slane %v206, %v210
    %v277 = vunpack.c.l.b16 %v126
    %v278 = vunpack.c.l.b16 %v127
    %v279 = vunpack.c.l.b16 %v128
    %v280 = vunpack.c.l.b16 %v129
    %v281 = vunpack.c.l.b16 %v130
    %v282 = vunpack.c.l.b16 %v131
    %v283 = vunpack.c.l.b16 %v132
    %v284 = vunpack.c.l.b16 %v133
    %v285 = vunpack.c.l.b16 %v134
    %v286 = vunpack.c.l.b16 %v135
    %v287 = vunpack.c.l.b16 %v136
    %v288 = vunpack.c.l.b16 %v137
    %v289 = vunpack.c.l.b16 %v138
    %v290 = vunpack.c.l.b16 %v139
    %v291 = vunpack.c.l.b16 %v140
    %v292 = vunpack.c.l.b16 %v141
    %v293 = vunpack.c.l.b16 %v142
    %v294 = vunpack.c.l.b16 %v143
    %v295 = vunpack.c.l.b16 %v144
    %v296 = vunpack.c.l.b16 %v145
    %v297 = vunpack.c.l.b16 %v146
    %v298 = vunpack.c.l.b16 %v147
    %v299 = vunpack.c.l.b16 %v148
    %v300 = vunpack.c.l.b16 %v149
    %v301 = vunpack.c.l.b16 %v150
    %v302 = vunpack.c.l.b16 %v151
    %v303 = vunpack.c.l.b16 %v152
    %v304 = vunpack.c.l.b16 %v153
    %v305 = vunpack.c.l.b16 %v154
    %v306 = vunpack.c.l.b16 %v155
    %v307 = vunpack.c.l.b16 %v156
    %v308 = vunpack.c.l.b16 %v157
    %v309 = vunpack.c.l.b16 %v158
    %v310 = vunpack.c.l.b16 %v159
    %v311 = vunpack.c.l.b16 %v160
    %v312 = vunpack.c.l.b16 %v161
    %v313 = vunpack.c.l.b16 %v162
    %v314 = vunpack.c.l.b16 %v163
    %v315 = vunpack.c.l.b16 %v164
    %v316 = vunpack.c.l.b16 %v165
    %v317 = vunpack.c.l.b16 %v166
    %v318 = vunpack.c.l.b16 %v167
    %v319 = vunpack.c.l.b16 %v168
    %v320 = vunpack.c.l.b16 %v169
    %v321 = vunpack.c.l.b16 %v170
    %v322 = vunpack.c.l.b16 %v171
    %v323 = vunpack.c.l.b16 %v172
    %v324 = vunpack.c.l.b16 %v173
    %v325 = vunpack.c.l.b16 %v174
    %v326 = vunpack.c.l.b16 %v175
    %v327 = vunpack.c.l.b16 %v176
    %v328 = vunpack.c.l.b16 %v177
    %v329 = vunpack.c.l.b16 %v178
    %v330 = vunpack.c.l.b16 %v179
    %v331 = vunpack.c.l.b16 %v180
    %v332 = vunpack.c.l.b16 %v181
    %v333 = vunpack.c.l.b16 %v182
    %v334 = vunpack.c.l.b16 %v183
    %v335 = vunpack.c.l.b16 %v184
    %v336 = vunpack.c.l.b16 %v185
    %v337 = vunpack.c.l.b16 %v186
    %v338 = vunpack.c.l.b16 %v187
    %v339 = vunpack.c.l.b16 %v188
    %v340 = vunpack.c.l.b16 %v189
    %v341 = vpack.c.b16 %v278, %v277
    %v342 = vpack.c.b16 %v280, %v279
    %v343 = vpack.c.b16 %v282, %v281
    %v344 = vpack.c.b16 %v284, %v283
    %v345 = vpack.c.b16 %v286, %v285
    %v346 = vpack.c.b16 %v288, %v287
    %v347 = vpack.c.b16 %v290, %v289
    %v348 = vpack.c.b16 %v292, %v291
    %v349 = vpack.c.b16 %v294, %v293
    %v350 = vpack.c.b16 %v296, %v295
    %v351 = vpack.c.b16 %v298, %v297
    %v352 = vpack.c.b16 %v300, %v299
    %v353 = vpack.c.b16 %v302, %v301
    %v354 = vpack.c.b16 %v304, %v303
    %v355 = vpack.c.b16 %v306, %v305
    %v356 = vpack.c.b16 %v308, %v307
    %v357 = vpack.c.b16 %v310, %v309
    %v358 = vpack.c.b16 %v312, %v311
    %v359 = vpack.c.b16 %v314, %v313
    %v360 = vpack.c.b16 %v316, %v315
    %v361 = vpack.c.b16 %v318, %v317
    %v362 = vpack.c.b16 %v320, %v319
    %v363 = vpack.c.b16 %v322, %v321
    %v364 = vpack.c.b16 %v324, %v323
    %v365 = vpack.c.b16 %v326, %v325
    %v366 = vpack.c.b16 %v328, %v327
    %v367 = vpack.c.b16 %v330, %v329
    %v368 = vpack.c.b16 %v332, %v331
    %v369 = vpack.c.b16 %v334, %v333
    %v370 = vpack.c.b16 %v336, %v335
    %v371 = vpack.c.b16 %v338, %v337
    %v372 = vpack.c.b16 %v340, %v339
    %v421 = vunpack.c.l.b16 %v190
    %v422 = vunpack.c.l.b16 %v191
    %v423 = vunpack.c.l.b16 %v192
    %v424 = vunpack.c.l.b16 %v193
    %v425 = vunpack.c.l.b16 %v194
    %v426 = vunpack.c.l.b16 %v195
    %v427 = vunpack.c.l.b16 %v196
    %v428 = vunpack.c.l.b16 %v197
    %v429 = vunpack.c.l.b16 %v198
    %v430 = vunpack.c.l.b16 %v199
    %v431 = vunpack.c.l.b16 %v200
    %v432 = vunpack.c.l.b16 %v201
    %v433 = vunpack.c.l.b16 %v202
    %v434 = vunpack.c.l.b16 %v203
    %v435 = vunpack.c.l.b16 %v204
    %v436 = vunpack.c.l.b16 %v205
    %v437 = vpack.c.b16 %v422, %v421
    %v438 = vpack.c.b16 %v424, %v423
    %v439 = vpack.c.b16 %v426, %v425
    %v440 = vpack.c.b16 %v428, %v427
    %v441 = vpack.c.b16 %v430, %v429
    %v442 = vpack.c.b16 %v432, %v431
    %v443 = vpack.c.b16 %v434, %v433
    %v444 = vpack.c.b16 %v436, %v435
    %453 = vmatprep.subr.bf16.mxu0 0
    %454 = vmatpush1.bf16.msra.mxu0 %v444
    %455 = vmatprep.subr.bf16.mxu0 0
    %456 = vmatpush1.bf16.msra.mxu0 %v443
    %457 = vmatprep.subr.bf16.mxu0 0
    %458 = vmatpush1.bf16.msra.mxu0 %v442
    %459 = vmatprep.subr.bf16.mxu0 0
    %460 = vmatpush1.bf16.msra.mxu0 %v441
    %461 = vmatprep.subr.bf16.mxu0 0
    %462 = vmatpush1.bf16.msra.mxu0 %v440
    %463 = vmatprep.subr.bf16.mxu0 0
    %464 = vmatpush1.bf16.msra.mxu0 %v439
    %465 = vmatprep.subr.bf16.mxu0 0
    %466 = vmatpush1.bf16.msra.mxu0 %v438
    %467 = vmatprep.subr.bf16.mxu0 0
    %468 = vmatpush1.bf16.msra.mxu0 %v437
    %469 = vmatprep.subr.bf16.mxu0 0
    %470 = vmatpush2.bf16.msra.mxu0 0
    %471 = vmatprep.subr.bf16.mxu0 0
    %472 = vmatpush2.bf16.msra.mxu0 0
    %473 = vmatprep.subr.bf16.mxu0 0
    %474 = vmatpush2.bf16.msra.mxu0 0
    %475 = vmatprep.subr.bf16.mxu0 0
    %476 = vmatpush2.bf16.msra.mxu0 0
    %477 = vmatprep.subr.bf16.mxu0 0
    %478 = vmatpush2.bf16.msra.mxu0 0
    %479 = vmatprep.subr.bf16.mxu0 0
    %480 = vmatpush2.bf16.msra.mxu0 0
    %481 = vmatprep.subr.bf16.mxu0 0
    %482 = vmatpush2.bf16.msra.mxu0 0
    %483 = vmatprep.subr.bf16.mxu0 0
    %484 = vmatpush2.bf16.msra.mxu0 0
    %485 = vmatprep.mubr.bf16.mxu0 0
    %486 = vmatmul.mubr.bf16.gmra.mxu0 %v341
    %v487 = vpop.f32.mrf.mxu0
    %v488 = vadd.f32 %v211, %v487
    %v489 = vpop.f32.mrf.mxu0
    %v490 = vpop.f32.mrf.mxu0
    %v491 = vadd.f32 %v211, %v490
    %v492 = vpop.f32.mrf.mxu0
    %493 = vmatprep.mubr.bf16.mxu0 0
    %494 = vmatmul.mubr.bf16.gmra.mxu0 %v342
    %v495 = vpop.f32.mrf.mxu0
    %v496 = vadd.f32 %v211, %v495
    %v497 = vpop.f32.mrf.mxu0
    %v498 = vpop.f32.mrf.mxu0
    %v499 = vadd.f32 %v211, %v498
    %v500 = vpop.f32.mrf.mxu0
    %501 = vmatprep.mubr.bf16.mxu0 0
    %502 = vmatmul.mubr.bf16.gmra.mxu0 %v343
    %v503 = vpop.f32.mrf.mxu0
    %v504 = vadd.f32 %v211, %v503
    %v505 = vpop.f32.mrf.mxu0
    %v506 = vpop.f32.mrf.mxu0
    %v507 = vadd.f32 %v211, %v506
    %v508 = vpop.f32.mrf.mxu0
    %509 = vmatprep.mubr.bf16.mxu0 0
    %510 = vmatmul.mubr.bf16.gmra.mxu0 %v344
    %v511 = vpop.f32.mrf.mxu0
    %v512 = vadd.f32 %v211, %v511
    %v513 = vpop.f32.mrf.mxu0
    %v514 = vpop.f32.mrf.mxu0
    %v515 = vadd.f32 %v211, %v514
    %v516 = vpop.f32.mrf.mxu0
    %517 = vmatprep.mubr.bf16.mxu0 0
    %518 = vmatmul.mubr.bf16.gmra.mxu0 %v345
    %v519 = vpop.f32.mrf.mxu0
    %v520 = vadd.f32 %v211, %v519
    %v521 = vpop.f32.mrf.mxu0
    %v522 = vpop.f32.mrf.mxu0
    %v523 = vadd.f32 %v211, %v522
    %v524 = vpop.f32.mrf.mxu0
    %525 = vmatprep.mubr.bf16.mxu0 0
    %526 = vmatmul.mubr.bf16.gmra.mxu0 %v346
    %v527 = vpop.f32.mrf.mxu0
    %v528 = vadd.f32 %v211, %v527
    %v529 = vpop.f32.mrf.mxu0
    %v530 = vpop.f32.mrf.mxu0
    %v531 = vadd.f32 %v211, %v530
    %v532 = vpop.f32.mrf.mxu0
    %533 = vmatprep.mubr.bf16.mxu0 0
    %534 = vmatmul.mubr.bf16.gmra.mxu0 %v347
    %v535 = vpop.f32.mrf.mxu0
    %v536 = vadd.f32 %v211, %v535
    %v537 = vpop.f32.mrf.mxu0
    %v538 = vpop.f32.mrf.mxu0
    %v539 = vadd.f32 %v211, %v538
    %v540 = vpop.f32.mrf.mxu0
    %541 = vmatprep.mubr.bf16.mxu0 0
    %542 = vmatmul.mubr.bf16.gmra.mxu0 %v348
    %v543 = vpop.f32.mrf.mxu0
    %v544 = vadd.f32 %v211, %v543
    %v545 = vpop.f32.mrf.mxu0
    %v546 = vpop.f32.mrf.mxu0
    %v547 = vadd.f32 %v211, %v546
    %v548 = vpop.f32.mrf.mxu0
    %549 = vmatprep.mubr.bf16.mxu0 0
    %550 = vmatmul.mubr.bf16.gmra.mxu0 %v349
    %v551 = vpop.f32.mrf.mxu0
    %v552 = vadd.f32 %v211, %v551
    %v553 = vpop.f32.mrf.mxu0
    %v554 = vpop.f32.mrf.mxu0
    %v555 = vadd.f32 %v211, %v554
    %v556 = vpop.f32.mrf.mxu0
    %557 = vmatprep.mubr.bf16.mxu0 0
    %558 = vmatmul.mubr.bf16.gmra.mxu0 %v350
    %v559 = vpop.f32.mrf.mxu0
    %v560 = vadd.f32 %v211, %v559
    %v561 = vpop.f32.mrf.mxu0
    %v562 = vpop.f32.mrf.mxu0
    %v563 = vadd.f32 %v211, %v562
    %v564 = vpop.f32.mrf.mxu0
    %565 = vmatprep.mubr.bf16.mxu0 0
    %566 = vmatmul.mubr.bf16.gmra.mxu0 %v351
    %v567 = vpop.f32.mrf.mxu0
    %v568 = vadd.f32 %v211, %v567
    %v569 = vpop.f32.mrf.mxu0
    %v570 = vpop.f32.mrf.mxu0
    %v571 = vadd.f32 %v211, %v570
    %v572 = vpop.f32.mrf.mxu0
    %573 = vmatprep.mubr.bf16.mxu0 0
    %574 = vmatmul.mubr.bf16.gmra.mxu0 %v352
    %v575 = vpop.f32.mrf.mxu0
    %v576 = vadd.f32 %v211, %v575
    %v577 = vpop.f32.mrf.mxu0
    %v578 = vpop.f32.mrf.mxu0
    %v579 = vadd.f32 %v211, %v578
    %v580 = vpop.f32.mrf.mxu0
    %581 = vmatprep.mubr.bf16.mxu0 0
    %582 = vmatmul.mubr.bf16.gmra.mxu0 %v353
    %v583 = vpop.f32.mrf.mxu0
    %v584 = vadd.f32 %v211, %v583
    %v585 = vpop.f32.mrf.mxu0
    %v586 = vpop.f32.mrf.mxu0
    %v587 = vadd.f32 %v211, %v586
    %v588 = vpop.f32.mrf.mxu0
    %589 = vmatprep.mubr.bf16.mxu0 0
    %590 = vmatmul.mubr.bf16.gmra.mxu0 %v354
    %v591 = vpop.f32.mrf.mxu0
    %v592 = vadd.f32 %v211, %v591
    %v593 = vpop.f32.mrf.mxu0
    %v594 = vpop.f32.mrf.mxu0
    %v595 = vadd.f32 %v211, %v594
    %v596 = vpop.f32.mrf.mxu0
    %597 = vmatprep.mubr.bf16.mxu0 0
    %598 = vmatmul.mubr.bf16.gmra.mxu0 %v355
    %v599 = vpop.f32.mrf.mxu0
    %v600 = vadd.f32 %v211, %v599
    %v601 = vpop.f32.mrf.mxu0
    %v602 = vpop.f32.mrf.mxu0
    %v603 = vadd.f32 %v211, %v602
    %v604 = vpop.f32.mrf.mxu0
    %605 = vmatprep.mubr.bf16.mxu0 0
    %606 = vmatmul.mubr.bf16.gmra.mxu0 %v356
    %v607 = vpop.f32.mrf.mxu0
    %v608 = vadd.f32 %v211, %v607
    %v609 = vpop.f32.mrf.mxu0
    %v610 = vpop.f32.mrf.mxu0
    %v611 = vadd.f32 %v211, %v610
    %v612 = vpop.f32.mrf.mxu0
    %613 = vmatprep.mubr.bf16.mxu0 0
    %614 = vmatmul.mubr.bf16.gmra.mxu0 %v357
    %v615 = vpop.f32.mrf.mxu0
    %v616 = vadd.f32 %v211, %v615
    %v617 = vpop.f32.mrf.mxu0
    %v618 = vpop.f32.mrf.mxu0
    %v619 = vadd.f32 %v211, %v618
    %v620 = vpop.f32.mrf.mxu0
    %621 = vmatprep.mubr.bf16.mxu0 0
    %622 = vmatmul.mubr.bf16.gmra.mxu0 %v358
    %v623 = vpop.f32.mrf.mxu0
    %v624 = vadd.f32 %v211, %v623
    %v625 = vpop.f32.mrf.mxu0
    %v626 = vpop.f32.mrf.mxu0
    %v627 = vadd.f32 %v211, %v626
    %v628 = vpop.f32.mrf.mxu0
    %629 = vmatprep.mubr.bf16.mxu0 0
    %630 = vmatmul.mubr.bf16.gmra.mxu0 %v359
    %v631 = vpop.f32.mrf.mxu0
    %v632 = vadd.f32 %v211, %v631
    %v633 = vpop.f32.mrf.mxu0
    %v634 = vpop.f32.mrf.mxu0
    %v635 = vadd.f32 %v211, %v634
    %v636 = vpop.f32.mrf.mxu0
    %637 = vmatprep.mubr.bf16.mxu0 0
    %638 = vmatmul.mubr.bf16.gmra.mxu0 %v360
    %v639 = vpop.f32.mrf.mxu0
    %v640 = vadd.f32 %v211, %v639
    %v641 = vpop.f32.mrf.mxu0
    %v642 = vpop.f32.mrf.mxu0
    %v643 = vadd.f32 %v211, %v642
    %v644 = vpop.f32.mrf.mxu0
    %645 = vmatprep.mubr.bf16.mxu0 0
    %646 = vmatmul.mubr.bf16.gmra.mxu0 %v361
    %v647 = vpop.f32.mrf.mxu0
    %v648 = vadd.f32 %v211, %v647
    %v649 = vpop.f32.mrf.mxu0
    %v650 = vpop.f32.mrf.mxu0
    %v651 = vadd.f32 %v211, %v650
    %v652 = vpop.f32.mrf.mxu0
    %653 = vmatprep.mubr.bf16.mxu0 0
    %654 = vmatmul.mubr.bf16.gmra.mxu0 %v362
    %v655 = vpop.f32.mrf.mxu0
    %v656 = vadd.f32 %v211, %v655
    %v657 = vpop.f32.mrf.mxu0
    %v658 = vpop.f32.mrf.mxu0
    %v659 = vadd.f32 %v211, %v658
    %v660 = vpop.f32.mrf.mxu0
    %661 = vmatprep.mubr.bf16.mxu0 0
    %662 = vmatmul.mubr.bf16.gmra.mxu0 %v363
    %v663 = vpop.f32.mrf.mxu0
    %v664 = vadd.f32 %v211, %v663
    %v665 = vpop.f32.mrf.mxu0
    %v666 = vpop.f32.mrf.mxu0
    %v667 = vadd.f32 %v211, %v666
    %v668 = vpop.f32.mrf.mxu0
    %669 = vmatprep.mubr.bf16.mxu0 0
    %670 = vmatmul.mubr.bf16.gmra.mxu0 %v364
    %v671 = vpop.f32.mrf.mxu0
    %v672 = vadd.f32 %v211, %v671
    %v673 = vpop.f32.mrf.mxu0
    %v674 = vpop.f32.mrf.mxu0
    %v675 = vadd.f32 %v211, %v674
    %v676 = vpop.f32.mrf.mxu0
    %677 = vmatprep.mubr.bf16.mxu0 0
    %678 = vmatmul.mubr.bf16.gmra.mxu0 %v365
    %v679 = vpop.f32.mrf.mxu0
    %v680 = vadd.f32 %v211, %v679
    %v681 = vpop.f32.mrf.mxu0
    %v682 = vpop.f32.mrf.mxu0
    %v683 = vadd.f32 %v211, %v682
    %v684 = vpop.f32.mrf.mxu0
    %685 = vmatprep.mubr.bf16.mxu0 0
    %686 = vmatmul.mubr.bf16.gmra.mxu0 %v366
    %v687 = vpop.f32.mrf.mxu0
    %v688 = vadd.f32 %v211, %v687
    %v689 = vpop.f32.mrf.mxu0
    %v690 = vpop.f32.mrf.mxu0
    %v691 = vadd.f32 %v211, %v690
    %v692 = vpop.f32.mrf.mxu0
    %693 = vmatprep.mubr.bf16.mxu0 0
    %694 = vmatmul.mubr.bf16.gmra.mxu0 %v367
    %v695 = vpop.f32.mrf.mxu0
    %v696 = vadd.f32 %v211, %v695
    %v697 = vpop.f32.mrf.mxu0
    %v698 = vpop.f32.mrf.mxu0
    %v699 = vadd.f32 %v211, %v698
    %v700 = vpop.f32.mrf.mxu0
    %701 = vmatprep.mubr.bf16.mxu0 0
    %702 = vmatmul.mubr.bf16.gmra.mxu0 %v368
    %v703 = vpop.f32.mrf.mxu0
    %v704 = vadd.f32 %v211, %v703
    %v705 = vpop.f32.mrf.mxu0
    %v706 = vpop.f32.mrf.mxu0
    %v707 = vadd.f32 %v211, %v706
    %v708 = vpop.f32.mrf.mxu0
    %709 = vmatprep.mubr.bf16.mxu0 0
    %710 = vmatmul.mubr.bf16.gmra.mxu0 %v369
    %v711 = vpop.f32.mrf.mxu0
    %v712 = vadd.f32 %v211, %v711
    %v713 = vpop.f32.mrf.mxu0
    %v714 = vpop.f32.mrf.mxu0
    %v715 = vadd.f32 %v211, %v714
    %v716 = vpop.f32.mrf.mxu0
    %717 = vmatprep.mubr.bf16.mxu0 0
    %718 = vmatmul.mubr.bf16.gmra.mxu0 %v370
    %v719 = vpop.f32.mrf.mxu0
    %v720 = vadd.f32 %v211, %v719
    %v721 = vpop.f32.mrf.mxu0
    %v722 = vpop.f32.mrf.mxu0
    %v723 = vadd.f32 %v211, %v722
    %v724 = vpop.f32.mrf.mxu0
    %725 = vmatprep.mubr.bf16.mxu0 0
    %726 = vmatmul.mubr.bf16.gmra.mxu0 %v371
    %v727 = vpop.f32.mrf.mxu0
    %v728 = vadd.f32 %v211, %v727
    %v729 = vpop.f32.mrf.mxu0
    %v730 = vpop.f32.mrf.mxu0
    %v731 = vadd.f32 %v211, %v730
    %v732 = vpop.f32.mrf.mxu0
    %733 = vmatprep.mubr.bf16.mxu0 0
    %734 = vmatmul.mubr.bf16.gmra.mxu0 %v372
    %v735 = vpop.f32.mrf.mxu0
    %v736 = vadd.f32 %v211, %v735
    %v737 = vpop.f32.mrf.mxu0
    %v738 = vpop.f32.mrf.mxu0
    %v739 = vadd.f32 %v211, %v738
    %v740 = vpop.f32.mrf.mxu0
    %741 = vdwg.mxu0
    %v742 = vmax.f32 %v488, 0.0
    %v743 = vmax.f32 %v491, 0.0
    %v744 = vmax.f32 %v496, 0.0
    %v745 = vmax.f32 %v499, 0.0
    %v746 = vmax.f32 %v504, 0.0
    %v747 = vmax.f32 %v507, 0.0
    %v748 = vmax.f32 %v512, 0.0
    %v749 = vmax.f32 %v515, 0.0
    %v750 = vmax.f32 %v520, 0.0
    %v751 = vmax.f32 %v523, 0.0
    %v752 = vmax.f32 %v528, 0.0
    %v753 = vmax.f32 %v531, 0.0
    %v754 = vmax.f32 %v536, 0.0
    %v755 = vmax.f32 %v539, 0.0
    %v756 = vmax.f32 %v544, 0.0
    %v757 = vmax.f32 %v547, 0.0
    %v758 = vmax.f32 %v552, 0.0
    %v759 = vmax.f32 %v555, 0.0
    %v760 = vmax.f32 %v560, 0.0
    %v761 = vmax.f32 %v563, 0.0
    %v762 = vmax.f32 %v568, 0.0
    %v763 = vmax.f32 %v571, 0.0
    %v764 = vmax.f32 %v576, 0.0
    %v765 = vmax.f32 %v579, 0.0
    %v766 = vmax.f32 %v584, 0.0
    %v767 = vmax.f32 %v587, 0.0
    %v768 = vmax.f32 %v592, 0.0
    %v769 = vmax.f32 %v595, 0.0
    %v770 = vmax.f32 %v600, 0.0
    %v771 = vmax.f32 %v603, 0.0
    %v772 = vmax.f32 %v608, 0.0
    %v773 = vmax.f32 %v611, 0.0
    %v774 = vmax.f32 %v616, 0.0
    %v775 = vmax.f32 %v619, 0.0
    %v776 = vmax.f32 %v624, 0.0
    %v777 = vmax.f32 %v627, 0.0
    %v778 = vmax.f32 %v632, 0.0
    %v779 = vmax.f32 %v635, 0.0
    %v780 = vmax.f32 %v640, 0.0
    %v781 = vmax.f32 %v643, 0.0
    %v782 = vmax.f32 %v648, 0.0
    %v783 = vmax.f32 %v651, 0.0
    %v784 = vmax.f32 %v656, 0.0
    %v785 = vmax.f32 %v659, 0.0
    %v786 = vmax.f32 %v664, 0.0
    %v787 = vmax.f32 %v667, 0.0
    %v788 = vmax.f32 %v672, 0.0
    %v789 = vmax.f32 %v675, 0.0
    %v790 = vmax.f32 %v680, 0.0
    %v791 = vmax.f32 %v683, 0.0
    %v792 = vmax.f32 %v688, 0.0
    %v793 = vmax.f32 %v691, 0.0
    %v794 = vmax.f32 %v696, 0.0
    %v795 = vmax.f32 %v699, 0.0
    %v796 = vmax.f32 %v704, 0.0
    %v797 = vmax.f32 %v707, 0.0
    %v798 = vmax.f32 %v712, 0.0
    %v799 = vmax.f32 %v715, 0.0
    %v800 = vmax.f32 %v720, 0.0
    %v801 = vmax.f32 %v723, 0.0
    %v802 = vmax.f32 %v728, 0.0
    %v803 = vmax.f32 %v731, 0.0
    %v804 = vmax.f32 %v736, 0.0
    %v805 = vmax.f32 %v739, 0.0
    %v806 = vadd.f32 %v742, %v743
    %v807 = vadd.f32 %v806, %v744
    %v808 = vadd.f32 %v807, %v745
    %v809 = vadd.f32 %v808, %v746
    %v810 = vadd.f32 %v809, %v747
    %v811 = vadd.f32 %v810, %v748
    %v812 = vadd.f32 %v811, %v749
    %v813 = vadd.f32 %v812, %v750
    %v814 = vadd.f32 %v813, %v751
    %v815 = vadd.f32 %v814, %v752
    %v816 = vadd.f32 %v815, %v753
    %v817 = vadd.f32 %v816, %v754
    %v818 = vadd.f32 %v817, %v755
    %v819 = vadd.f32 %v818, %v756
    %v820 = vadd.f32 %v819, %v757
    %v821 = vadd.f32 %v820, %v758
    %v822 = vadd.f32 %v821, %v759
    %v823 = vadd.f32 %v822, %v760
    %v824 = vadd.f32 %v823, %v761
    %v825 = vadd.f32 %v824, %v762
    %v826 = vadd.f32 %v825, %v763
    %v827 = vadd.f32 %v826, %v764
    %v828 = vadd.f32 %v827, %v765
    %v829 = vadd.f32 %v828, %v766
    %v830 = vadd.f32 %v829, %v767
    %v831 = vadd.f32 %v830, %v768
    %v832 = vadd.f32 %v831, %v769
    %v833 = vadd.f32 %v832, %v770
    %v834 = vadd.f32 %v833, %v771
    %v835 = vadd.f32 %v834, %v772
    %v836 = vadd.f32 %v835, %v773
    %v837 = vrot.slane %v836, 4
    %v838 = vadd.f32 %v836, %v837
    %v839 = vrot.slane %v838, 2
    %v840 = vadd.f32 %v838, %v839
    %v841 = vrot.slane %v840, 1
    %v842 = vadd.f32 %v840, %v841
    %v843 = vrcp.pop 256.0
    %v844 = vmul.f32 %v842, %v843
    %v845 = vadd.f32 %v774, %v775
    %v846 = vadd.f32 %v845, %v776
    %v847 = vadd.f32 %v846, %v777
    %v848 = vadd.f32 %v847, %v778
    %v849 = vadd.f32 %v848, %v779
    %v850 = vadd.f32 %v849, %v780
    %v851 = vadd.f32 %v850, %v781
    %v852 = vadd.f32 %v851, %v782
    %v853 = vadd.f32 %v852, %v783
    %v854 = vadd.f32 %v853, %v784
    %v855 = vadd.f32 %v854, %v785
    %v856 = vadd.f32 %v855, %v786
    %v857 = vadd.f32 %v856, %v787
    %v858 = vadd.f32 %v857, %v788
    %v859 = vadd.f32 %v858, %v789
    %v860 = vadd.f32 %v859, %v790
    %v861 = vadd.f32 %v860, %v791
    %v862 = vadd.f32 %v861, %v792
    %v863 = vadd.f32 %v862, %v793
    %v864 = vadd.f32 %v863, %v794
    %v865 = vadd.f32 %v864, %v795
    %v866 = vadd.f32 %v865, %v796
    %v867 = vadd.f32 %v866, %v797
    %v868 = vadd.f32 %v867, %v798
    %v869 = vadd.f32 %v868, %v799
    %v870 = vadd.f32 %v869, %v800
    %v871 = vadd.f32 %v870, %v801
    %v872 = vadd.f32 %v871, %v802
    %v873 = vadd.f32 %v872, %v803
    %v874 = vadd.f32 %v873, %v804
    %v875 = vadd.f32 %v874, %v805
    %v876 = vrot.slane %v875, 4
    %v877 = vadd.f32 %v875, %v876
    %v878 = vrot.slane %v877, 2
    %v879 = vadd.f32 %v877, %v878
    %v880 = vrot.slane %v879, 1
    %v881 = vadd.f32 %v879, %v880
    %v882 = vmul.f32 %v881, %v843
    %vm883 = vcmask 1040384
    %v884 = vsel %vm883, %v844, %v882
    %885 = vst [vmem:[#allocation13] sm:$0x3] %v884
    %v886 = vpack.c.bf16 %v884, %v884
    %v887 = vld [vmem:[#allocation7] sm:$0xf]
    %v888 = vld [vmem:[#allocation7 + $0x4] sm:$0xf]
    %v889 = vld [vmem:[#allocation7 + $0x8] sm:$0xf]
    %v890 = vld [vmem:[#allocation7 + $0xc] sm:$0xf]
    %v891 = vld [vmem:[#allocation7 + $0x10] sm:$0xf]
    %v892 = vld [vmem:[#allocation7 + $0x14] sm:$0xf]
    %v893 = vld [vmem:[#allocation7 + $0x18] sm:$0xf]
    %v894 = vld [vmem:[#allocation7 + $0x1c] sm:$0xf]
    %v895 = vld [vmem:[#allocation7 + $0x20] sm:$0xf]
    %v896 = vld [vmem:[#allocation7 + $0x24] sm:$0xf]
    %v897 = vld [vmem:[#allocation7 + $0x28] sm:$0xf]
    %v898 = vld [vmem:[#allocation7 + $0x2c] sm:$0xf]
    %v899 = vld [vmem:[#allocation7 + $0x30] sm:$0xf]
    %v900 = vld [vmem:[#allocation7 + $0x34] sm:$0xf]
    %v901 = vld [vmem:[#allocation7 + $0x38] sm:$0xf]
    %v902 = vld [vmem:[#allocation7 + $0x3c] sm:$0xf]
    %v903 = vld [vmem:[%s6] sm:$0x1]
    %v905 = vlaneseq
    %v906 = vshrl.u32 %v905, 7
    %v907 = vsub.s32 0, %v906
    %v908 = vrot.slane %v903, %v907
    %v926 = vunpack.c.l.b16 %v887
    %v927 = vunpack.c.l.b16 %v888
    %v928 = vunpack.c.l.b16 %v889
    %v929 = vunpack.c.l.b16 %v890
    %v930 = vunpack.c.l.b16 %v891
    %v931 = vunpack.c.l.b16 %v892
    %v932 = vunpack.c.l.b16 %v893
    %v933 = vunpack.c.l.b16 %v894
    %v934 = vunpack.c.l.b16 %v895
    %v935 = vunpack.c.l.b16 %v896
    %v936 = vunpack.c.l.b16 %v897
    %v937 = vunpack.c.l.b16 %v898
    %v938 = vunpack.c.l.b16 %v899
    %v939 = vunpack.c.l.b16 %v900
    %v940 = vunpack.c.l.b16 %v901
    %v941 = vunpack.c.l.b16 %v902
    %v942 = vpack.c.b16 %v927, %v926
    %v943 = vpack.c.b16 %v929, %v928
    %v944 = vpack.c.b16 %v931, %v930
    %v945 = vpack.c.b16 %v933, %v932
    %v946 = vpack.c.b16 %v935, %v934
    %v947 = vpack.c.b16 %v937, %v936
    %v948 = vpack.c.b16 %v939, %v938
    %v949 = vpack.c.b16 %v941, %v940
    %958 = vmatprep.subr.bf16.mxu0 0
    %959 = vmatpush1.bf16.msra.mxu0 %v949
    %960 = vmatprep.subr.bf16.mxu0 0
    %961 = vmatpush1.bf16.msra.mxu0 %v948
    %962 = vmatprep.subr.bf16.mxu0 0
    %963 = vmatpush1.bf16.msra.mxu0 %v947
    %964 = vmatprep.subr.bf16.mxu0 0
    %965 = vmatpush1.bf16.msra.mxu0 %v946
    %966 = vmatprep.subr.bf16.mxu0 0
    %967 = vmatpush1.bf16.msra.mxu0 %v945
    %968 = vmatprep.subr.bf16.mxu0 0
    %969 = vmatpush1.bf16.msra.mxu0 %v944
    %970 = vmatprep.subr.bf16.mxu0 0
    %971 = vmatpush1.bf16.msra.mxu0 %v943
    %972 = vmatprep.subr.bf16.mxu0 0
    %973 = vmatpush1.bf16.msra.mxu0 %v942
    %974 = vmatprep.subr.bf16.mxu0 0
    %975 = vmatpush2.bf16.msra.mxu0 0
    %976 = vmatprep.subr.bf16.mxu0 0
    %977 = vmatpush2.bf16.msra.mxu0 0
    %978 = vmatprep.subr.bf16.mxu0 0
    %979 = vmatpush2.bf16.msra.mxu0 0
    %980 = vmatprep.subr.bf16.mxu0 0
    %981 = vmatpush2.bf16.msra.mxu0 0
    %982 = vmatprep.subr.bf16.mxu0 0
    %983 = vmatpush2.bf16.msra.mxu0 0
    %984 = vmatprep.subr.bf16.mxu0 0
    %985 = vmatpush2.bf16.msra.mxu0 0
    %986 = vmatprep.subr.bf16.mxu0 0
    %987 = vmatpush2.bf16.msra.mxu0 0
    %988 = vmatprep.subr.bf16.mxu0 0
    %989 = vmatpush2.bf16.msra.mxu0 0
    %990 = vmatprep.mubr.bf16.mxu0 0
    %991 = vmatmul.mubr.bf16.gmra.mxu0 %v886
    %v992 = vpop.f32.mrf.mxu0
    %v993 = vadd.f32 %v908, %v992
    %v994 = vpop.f32.mrf.mxu0
    %v995 = vpop.f32.mrf.mxu0
    %v996 = vpop.f32.mrf.mxu0
    %997 = vdwg.mxu0
    %v998 = vld [vmem:[%s3] sm:$0x1]
    %v1000 = vlaneseq
    %v1001 = vshrl.u32 %v1000, 7
    %v1002 = vsub.s32 0, %v1001
    %v1003 = vrot.slane %v998, %v1002
    %v1005 = vpack.c.bf16 %v1003, %v1003
    %v1006 = vld [vmem:[#allocation8] sm:$0xf]
    %v1007 = vld [vmem:[#allocation8 + $0x4] sm:$0xf]
    %v1008 = vld [vmem:[#allocation8 + $0x8] sm:$0xf]
    %v1009 = vld [vmem:[#allocation8 + $0xc] sm:$0xf]
    %v1010 = vld [vmem:[#allocation8 + $0x10] sm:$0xf]
    %v1011 = vld [vmem:[#allocation8 + $0x14] sm:$0xf]
    %v1012 = vld [vmem:[#allocation8 + $0x18] sm:$0xf]
    %v1013 = vld [vmem:[#allocation8 + $0x1c] sm:$0xf]
    %v1014 = vld [vmem:[#allocation8 + $0x20] sm:$0xf]
    %v1015 = vld [vmem:[#allocation8 + $0x24] sm:$0xf]
    %v1016 = vld [vmem:[#allocation8 + $0x28] sm:$0xf]
    %v1017 = vld [vmem:[#allocation8 + $0x2c] sm:$0xf]
    %v1018 = vld [vmem:[#allocation8 + $0x30] sm:$0xf]
    %v1019 = vld [vmem:[#allocation8 + $0x34] sm:$0xf]
    %v1020 = vld [vmem:[#allocation8 + $0x38] sm:$0xf]
    %v1021 = vld [vmem:[#allocation8 + $0x3c] sm:$0xf]
    %v1038 = vunpack.c.l.b16 %v1006
    %v1039 = vunpack.c.l.b16 %v1007
    %v1040 = vunpack.c.l.b16 %v1008
    %v1041 = vunpack.c.l.b16 %v1009
    %v1042 = vunpack.c.l.b16 %v1010
    %v1043 = vunpack.c.l.b16 %v1011
    %v1044 = vunpack.c.l.b16 %v1012
    %v1045 = vunpack.c.l.b16 %v1013
    %v1046 = vunpack.c.l.b16 %v1014
    %v1047 = vunpack.c.l.b16 %v1015
    %v1048 = vunpack.c.l.b16 %v1016
    %v1049 = vunpack.c.l.b16 %v1017
    %v1050 = vunpack.c.l.b16 %v1018
    %v1051 = vunpack.c.l.b16 %v1019
    %v1052 = vunpack.c.l.b16 %v1020
    %v1053 = vunpack.c.l.b16 %v1021
    %v1054 = vpack.c.b16 %v1039, %v1038
    %v1055 = vpack.c.b16 %v1041, %v1040
    %v1056 = vpack.c.b16 %v1043, %v1042
    %v1057 = vpack.c.b16 %v1045, %v1044
    %v1058 = vpack.c.b16 %v1047, %v1046
    %v1059 = vpack.c.b16 %v1049, %v1048
    %v1060 = vpack.c.b16 %v1051, %v1050
    %v1061 = vpack.c.b16 %v1053, %v1052
    %1070 = vmatprep.subr.bf16.mxu0 0
    %1071 = vmatpush1.bf16.msra.mxu0 %v1061
    %1072 = vmatprep.subr.bf16.mxu0 0
    %1073 = vmatpush1.bf16.msra.mxu0 %v1060
    %1074 = vmatprep.subr.bf16.mxu0 0
    %1075 = vmatpush1.bf16.msra.mxu0 %v1059
    %1076 = vmatprep.subr.bf16.mxu0 0
    %1077 = vmatpush1.bf16.msra.mxu0 %v1058
    %1078 = vmatprep.subr.bf16.mxu0 0
    %1079 = vmatpush1.bf16.msra.mxu0 %v1057
    %1080 = vmatprep.subr.bf16.mxu0 0
    %1081 = vmatpush1.bf16.msra.mxu0 %v1056
    %1082 = vmatprep.subr.bf16.mxu0 0
    %1083 = vmatpush1.bf16.msra.mxu0 %v1055
    %1084 = vmatprep.subr.bf16.mxu0 0
    %1085 = vmatpush1.bf16.msra.mxu0 %v1054
    %1086 = vmatprep.subr.bf16.mxu0 0
    %1087 = vmatpush2.bf16.msra.mxu0 0
    %1088 = vmatprep.subr.bf16.mxu0 0
    %1089 = vmatpush2.bf16.msra.mxu0 0
    %1090 = vmatprep.subr.bf16.mxu0 0
    %1091 = vmatpush2.bf16.msra.mxu0 0
    %1092 = vmatprep.subr.bf16.mxu0 0
    %1093 = vmatpush2.bf16.msra.mxu0 0
    %1094 = vmatprep.subr.bf16.mxu0 0
    %1095 = vmatpush2.bf16.msra.mxu0 0
    %1096 = vmatprep.subr.bf16.mxu0 0
    %1097 = vmatpush2.bf16.msra.mxu0 0
    %1098 = vmatprep.subr.bf16.mxu0 0
    %1099 = vmatpush2.bf16.msra.mxu0 0
    %1100 = vmatprep.subr.bf16.mxu0 0
    %1101 = vmatpush2.bf16.msra.mxu0 0
    %1102 = vmatprep.mubr.bf16.mxu0 0
    %1103 = vmatmul.mubr.bf16.gmra.mxu0 %v1005
    %v1104 = vpop.f32.mrf.mxu0
    %v1105 = vadd.f32 0.0, %v1104
    %v1106 = vpop.f32.mrf.mxu0
    %v1107 = vpop.f32.mrf.mxu0
    %v1108 = vpop.f32.mrf.mxu0
    %1109 = vdwg.mxu0
    %v1110 = vadd.f32 %v993, %v1105
    %v1111 = vmax.f32 %v1110, 0.0
    %v1112 = vpack.c.bf16 %v1111, %v1111
    %v1113 = vld [vmem:[#allocation10] sm:$0xf]
    %v1114 = vld [vmem:[#allocation10 + $0x4] sm:$0xf]
    %v1115 = vld [vmem:[#allocation10 + $0x8] sm:$0xf]
    %v1116 = vld [vmem:[#allocation10 + $0xc] sm:$0xf]
    %v1117 = vld [vmem:[#allocation10 + $0x10] sm:$0xf]
    %v1118 = vld [vmem:[#allocation10 + $0x14] sm:$0xf]
    %v1119 = vld [vmem:[#allocation10 + $0x18] sm:$0xf]
    %v1120 = vld [vmem:[#allocation10 + $0x1c] sm:$0xf]
    %v1121 = vld [vmem:[#allocation10 + $0x20] sm:$0xf]
    %v1122 = vld [vmem:[#allocation10 + $0x24] sm:$0xf]
    %v1123 = vld [vmem:[#allocation10 + $0x28] sm:$0xf]
    %v1124 = vld [vmem:[#allocation10 + $0x2c] sm:$0xf]
    %v1125 = vld [vmem:[#allocation10 + $0x30] sm:$0xf]
    %v1126 = vld [vmem:[#allocation10 + $0x34] sm:$0xf]
    %v1127 = vld [vmem:[#allocation10 + $0x38] sm:$0xf]
    %v1128 = vld [vmem:[#allocation10 + $0x3c] sm:$0xf]
    %v1129 = vld [vmem:[%s8] sm:$0x1]
    %v1131 = vlaneseq
    %v1132 = vshrl.u32 %v1131, 7
    %v1133 = vsub.s32 0, %v1132
    %v1134 = vrot.slane %v1129, %v1133
    %v1152 = vunpack.c.l.b16 %v1113
    %v1153 = vunpack.c.l.b16 %v1114
    %v1154 = vunpack.c.l.b16 %v1115
    %v1155 = vunpack.c.l.b16 %v1116
    %v1156 = vunpack.c.l.b16 %v1117
    %v1157 = vunpack.c.l.b16 %v1118
    %v1158 = vunpack.c.l.b16 %v1119
    %v1159 = vunpack.c.l.b16 %v1120
    %v1160 = vunpack.c.l.b16 %v1121
    %v1161 = vunpack.c.l.b16 %v1122
    %v1162 = vunpack.c.l.b16 %v1123
    %v1163 = vunpack.c.l.b16 %v1124
    %v1164 = vunpack.c.l.b16 %v1125
    %v1165 = vunpack.c.l.b16 %v1126
    %v1166 = vunpack.c.l.b16 %v1127
    %v1167 = vunpack.c.l.b16 %v1128
    %v1168 = vpack.c.b16 %v1153, %v1152
    %v1169 = vpack.c.b16 %v1155, %v1154
    %v1170 = vpack.c.b16 %v1157, %v1156
    %v1171 = vpack.c.b16 %v1159, %v1158
    %v1172 = vpack.c.b16 %v1161, %v1160
    %v1173 = vpack.c.b16 %v1163, %v1162
    %v1174 = vpack.c.b16 %v1165, %v1164
    %v1175 = vpack.c.b16 %v1167, %v1166
    %1184 = vmatprep.subr.bf16.mxu0 0
    %1185 = vmatpush1.bf16.msra.mxu0 %v1175
    %1186 = vmatprep.subr.bf16.mxu0 0
    %1187 = vmatpush1.bf16.msra.mxu0 %v1174
    %1188 = vmatprep.subr.bf16.mxu0 0
    %1189 = vmatpush1.bf16.msra.mxu0 %v1173
    %1190 = vmatprep.subr.bf16.mxu0 0
    %1191 = vmatpush1.bf16.msra.mxu0 %v1172
    %1192 = vmatprep.subr.bf16.mxu0 0
    %1193 = vmatpush1.bf16.msra.mxu0 %v1171
    %1194 = vmatprep.subr.bf16.mxu0 0
    %1195 = vmatpush1.bf16.msra.mxu0 %v1170
    %1196 = vmatprep.subr.bf16.mxu0 0
    %1197 = vmatpush1.bf16.msra.mxu0 %v1169
    %1198 = vmatprep.subr.bf16.mxu0 0
    %1199 = vmatpush1.bf16.msra.mxu0 %v1168
    %1200 = vmatprep.subr.bf16.mxu0 0
    %1201 = vmatpush2.bf16.msra.mxu0 0
    %1202 = vmatprep.subr.bf16.mxu0 0
    %1203 = vmatpush2.bf16.msra.mxu0 0
    %1204 = vmatprep.subr.bf16.mxu0 0
    %1205 = vmatpush2.bf16.msra.mxu0 0
    %1206 = vmatprep.subr.bf16.mxu0 0
    %1207 = vmatpush2.bf16.msra.mxu0 0
    %1208 = vmatprep.subr.bf16.mxu0 0
    %1209 = vmatpush2.bf16.msra.mxu0 0
    %1210 = vmatprep.subr.bf16.mxu0 0
    %1211 = vmatpush2.bf16.msra.mxu0 0
    %1212 = vmatprep.subr.bf16.mxu0 0
    %1213 = vmatpush2.bf16.msra.mxu0 0
    %1214 = vmatprep.subr.bf16.mxu0 0
    %1215 = vmatpush2.bf16.msra.mxu0 0
    %1216 = vmatprep.mubr.bf16.mxu0 0
    %1217 = vmatmul.mubr.bf16.gmra.mxu0 %v1112
    %v1218 = vpop.f32.mrf.mxu0
    %v1219 = vadd.f32 %v1134, %v1218
    %v1220 = vpop.f32.mrf.mxu0
    %v1221 = vpop.f32.mrf.mxu0
    %v1222 = vpop.f32.mrf.mxu0
    %1223 = vdwg.mxu0
    %v1224 = vmax.f32 %v1219, 0.0
    %v1225 = vpack.c.bf16 %v1224, %v1224
    %v1226 = vld [vmem:[#allocation11] sm:$0xf]
    %v1227 = vld [vmem:[#allocation11 + $0x4] sm:$0xf]
    %v1228 = vld [vmem:[#allocation11 + $0x8] sm:$0xf]
    %v1229 = vld [vmem:[#allocation11 + $0xc] sm:$0xf]
    %v1230 = vld [vmem:[#allocation11 + $0x10] sm:$0xf]
    %v1231 = vld [vmem:[#allocation11 + $0x14] sm:$0xf]
    %v1232 = vld [vmem:[#allocation11 + $0x18] sm:$0xf]
    %v1233 = vld [vmem:[#allocation11 + $0x1c] sm:$0xf]
    %v1234 = vld [vmem:[#allocation11 + $0x20] sm:$0xf]
    %v1235 = vld [vmem:[#allocation11 + $0x24] sm:$0xf]
    %v1236 = vld [vmem:[#allocation11 + $0x28] sm:$0xf]
    %v1237 = vld [vmem:[#allocation11 + $0x2c] sm:$0xf]
    %v1238 = vld [vmem:[#allocation11 + $0x30] sm:$0xf]
    %v1239 = vld [vmem:[#allocation11 + $0x34] sm:$0xf]
    %v1240 = vld [vmem:[#allocation11 + $0x38] sm:$0xf]
    %v1241 = vld [vmem:[#allocation11 + $0x3c] sm:$0xf]
    %v1242 = vld [vmem:[%s10] sm:$0x1]
    %v1244 = vlaneseq
    %v1245 = vshrl.u32 %v1244, 7
    %v1246 = vsub.s32 0, %v1245
    %v1247 = vrot.slane %v1242, %v1246
    %v1265 = vunpack.c.l.b16 %v1226
    %v1266 = vunpack.c.l.b16 %v1227
    %v1267 = vunpack.c.l.b16 %v1228
    %v1268 = vunpack.c.l.b16 %v1229
    %v1269 = vunpack.c.l.b16 %v1230
    %v1270 = vunpack.c.l.b16 %v1231
    %v1271 = vunpack.c.l.b16 %v1232
    %v1272 = vunpack.c.l.b16 %v1233
    %v1273 = vunpack.c.l.b16 %v1234
    %v1274 = vunpack.c.l.b16 %v1235
    %v1275 = vunpack.c.l.b16 %v1236
    %v1276 = vunpack.c.l.b16 %v1237
    %v1277 = vunpack.c.l.b16 %v1238
    %v1278 = vunpack.c.l.b16 %v1239
    %v1279 = vunpack.c.l.b16 %v1240
    %v1280 = vunpack.c.l.b16 %v1241
    %v1281 = vpack.c.b16 %v1266, %v1265
    %v1282 = vpack.c.b16 %v1268, %v1267
    %v1283 = vpack.c.b16 %v1270, %v1269
    %v1284 = vpack.c.b16 %v1272, %v1271
    %v1285 = vpack.c.b16 %v1274, %v1273
    %v1286 = vpack.c.b16 %v1276, %v1275
    %v1287 = vpack.c.b16 %v1278, %v1277
    %v1288 = vpack.c.b16 %v1280, %v1279
    %1297 = vmatprep.subr.bf16.mxu0 0
    %1298 = vmatpush1.bf16.msra.mxu0 %v1288
    %1299 = vmatprep.subr.bf16.mxu0 0
    %1300 = vmatpush1.bf16.msra.mxu0 %v1287
    %1301 = vmatprep.subr.bf16.mxu0 0
    %1302 = vmatpush1.bf16.msra.mxu0 %v1286
    %1303 = vmatprep.subr.bf16.mxu0 0
    %1304 = vmatpush1.bf16.msra.mxu0 %v1285
    %1305 = vmatprep.subr.bf16.mxu0 0
    %1306 = vmatpush1.bf16.msra.mxu0 %v1284
    %1307 = vmatprep.subr.bf16.mxu0 0
    %1308 = vmatpush1.bf16.msra.mxu0 %v1283
    %1309 = vmatprep.subr.bf16.mxu0 0
    %1310 = vmatpush1.bf16.msra.mxu0 %v1282
    %1311 = vmatprep.subr.bf16.mxu0 0
    %1312 = vmatpush1.bf16.msra.mxu0 %v1281
    %1313 = vmatprep.subr.bf16.mxu0 0
    %1314 = vmatpush2.bf16.msra.mxu0 0
    %1315 = vmatprep.subr.bf16.mxu0 0
    %1316 = vmatpush2.bf16.msra.mxu0 0
    %1317 = vmatprep.subr.bf16.mxu0 0
    %1318 = vmatpush2.bf16.msra.mxu0 0
    %1319 = vmatprep.subr.bf16.mxu0 0
    %1320 = vmatpush2.bf16.msra.mxu0 0
    %1321 = vmatprep.subr.bf16.mxu0 0
    %1322 = vmatpush2.bf16.msra.mxu0 0
    %1323 = vmatprep.subr.bf16.mxu0 0
    %1324 = vmatpush2.bf16.msra.mxu0 0
    %1325 = vmatprep.subr.bf16.mxu0 0
    %1326 = vmatpush2.bf16.msra.mxu0 0
    %1327 = vmatprep.subr.bf16.mxu0 0
    %1328 = vmatpush2.bf16.msra.mxu0 0
    %1329 = vmatprep.mubr.bf16.mxu0 0
    %1330 = vmatmul.mubr.bf16.gmra.mxu0 %v1225
    %v1331 = vpop.f32.mrf.mxu0
    %v1332 = vadd.f32 %v1247, %v1331
    %v1333 = vpop.f32.mrf.mxu0
    %v1334 = vpop.f32.mrf.mxu0
    %v1335 = vpop.f32.mrf.mxu0
    %1336 = vdwg.mxu0
    %v1337 = vadd.f32 %v1003, %v1332
    %1338 = vst [vmem:[#allocation14] sm:$0x3] %v1337
    %1339 = vst [vmem:[#allocation16] sm:$0x3] %v1332
    %v1340 = vpack.c.bf16 %v1337, %v1337
    %v1341 = vld [vmem:[#allocation8] sm:$0xf]
    %v1342 = vld [vmem:[#allocation8 + $0x4] sm:$0xf]
    %v1343 = vld [vmem:[#allocation8 + $0x8] sm:$0xf]
    %v1344 = vld [vmem:[#allocation8 + $0xc] sm:$0xf]
    %v1345 = vld [vmem:[#allocation8 + $0x10] sm:$0xf]
    %v1346 = vld [vmem:[#allocation8 + $0x14] sm:$0xf]
    %v1347 = vld [vmem:[#allocation8 + $0x18] sm:$0xf]
    %v1348 = vld [vmem:[#allocation8 + $0x1c] sm:$0xf]
    %v1349 = vld [vmem:[#allocation8 + $0x20] sm:$0xf]
    %v1350 = vld [vmem:[#allocation8 + $0x24] sm:$0xf]
    %v1351 = vld [vmem:[#allocation8 + $0x28] sm:$0xf]
    %v1352 = vld [vmem:[#allocation8 + $0x2c] sm:$0xf]
    %v1353 = vld [vmem:[#allocation8 + $0x30] sm:$0xf]
    %v1354 = vld [vmem:[#allocation8 + $0x34] sm:$0xf]
    %v1355 = vld [vmem:[#allocation8 + $0x38] sm:$0xf]
    %v1356 = vld [vmem:[#allocation8 + $0x3c] sm:$0xf]
    %v1373 = vunpack.c.l.b16 %v1341
    %v1374 = vunpack.c.l.b16 %v1342
    %v1375 = vunpack.c.l.b16 %v1343
    %v1376 = vunpack.c.l.b16 %v1344
    %v1377 = vunpack.c.l.b16 %v1345
    %v1378 = vunpack.c.l.b16 %v1346
    %v1379 = vunpack.c.l.b16 %v1347
    %v1380 = vunpack.c.l.b16 %v1348
    %v1381 = vunpack.c.l.b16 %v1349
    %v1382 = vunpack.c.l.b16 %v1350
    %v1383 = vunpack.c.l.b16 %v1351
    %v1384 = vunpack.c.l.b16 %v1352
    %v1385 = vunpack.c.l.b16 %v1353
    %v1386 = vunpack.c.l.b16 %v1354
    %v1387 = vunpack.c.l.b16 %v1355
    %v1388 = vunpack.c.l.b16 %v1356
    %v1389 = vpack.c.b16 %v1374, %v1373
    %v1390 = vpack.c.b16 %v1376, %v1375
    %v1391 = vpack.c.b16 %v1378, %v1377
    %v1392 = vpack.c.b16 %v1380, %v1379
    %v1393 = vpack.c.b16 %v1382, %v1381
    %v1394 = vpack.c.b16 %v1384, %v1383
    %v1395 = vpack.c.b16 %v1386, %v1385
    %v1396 = vpack.c.b16 %v1388, %v1387
    %1405 = vmatprep.subr.bf16.mxu0 0
    %1406 = vmatpush1.bf16.msra.mxu0 %v1396
    %1407 = vmatprep.subr.bf16.mxu0 0
    %1408 = vmatpush1.bf16.msra.mxu0 %v1395
    %1409 = vmatprep.subr.bf16.mxu0 0
    %1410 = vmatpush1.bf16.msra.mxu0 %v1394
    %1411 = vmatprep.subr.bf16.mxu0 0
    %1412 = vmatpush1.bf16.msra.mxu0 %v1393
    %1413 = vmatprep.subr.bf16.mxu0 0
    %1414 = vmatpush1.bf16.msra.mxu0 %v1392
    %1415 = vmatprep.subr.bf16.mxu0 0
    %1416 = vmatpush1.bf16.msra.mxu0 %v1391
    %1417 = vmatprep.subr.bf16.mxu0 0
    %1418 = vmatpush1.bf16.msra.mxu0 %v1390
    %1419 = vmatprep.subr.bf16.mxu0 0
    %1420 = vmatpush1.bf16.msra.mxu0 %v1389
    %1421 = vmatprep.subr.bf16.mxu0 0
    %1422 = vmatpush2.bf16.msra.mxu0 0
    %1423 = vmatprep.subr.bf16.mxu0 0
    %1424 = vmatpush2.bf16.msra.mxu0 0
    %1425 = vmatprep.subr.bf16.mxu0 0
    %1426 = vmatpush2.bf16.msra.mxu0 0
    %1427 = vmatprep.subr.bf16.mxu0 0
    %1428 = vmatpush2.bf16.msra.mxu0 0
    %1429 = vmatprep.subr.bf16.mxu0 0
    %1430 = vmatpush2.bf16.msra.mxu0 0
    %1431 = vmatprep.subr.bf16.mxu0 0
    %1432 = vmatpush2.bf16.msra.mxu0 0
    %1433 = vmatprep.subr.bf16.mxu0 0
    %1434 = vmatpush2.bf16.msra.mxu0 0
    %1435 = vmatprep.subr.bf16.mxu0 0
    %1436 = vmatpush2.bf16.msra.mxu0 0
    %1437 = vmatprep.mubr.bf16.mxu0 0
    %1438 = vmatmul.mubr.bf16.gmra.mxu0 %v1340
    %v1439 = vpop.f32.mrf.mxu0
    %v1440 = vadd.f32 0.0, %v1439
    %v1441 = vpop.f32.mrf.mxu0
    %v1442 = vpop.f32.mrf.mxu0
    %v1443 = vpop.f32.mrf.mxu0
    %1444 = vdwg.mxu0
    %v1445 = vadd.f32 %v993, %v1440
    %v1446 = vmax.f32 %v1445, 0.0
    %v1447 = vpack.c.bf16 %v1446, %v1446
    %v1448 = vld [vmem:[#allocation10] sm:$0xf]
    %v1449 = vld [vmem:[#allocation10 + $0x4] sm:$0xf]
    %v1450 = vld [vmem:[#allocation10 + $0x8] sm:$0xf]
    %v1451 = vld [vmem:[#allocation10 + $0xc] sm:$0xf]
    %v1452 = vld [vmem:[#allocation10 + $0x10] sm:$0xf]
    %v1453 = vld [vmem:[#allocation10 + $0x14] sm:$0xf]
    %v1454 = vld [vmem:[#allocation10 + $0x18] sm:$0xf]
    %v1455 = vld [vmem:[#allocation10 + $0x1c] sm:$0xf]
    %v1456 = vld [vmem:[#allocation10 + $0x20] sm:$0xf]
    %v1457 = vld [vmem:[#allocation10 + $0x24] sm:$0xf]
    %v1458 = vld [vmem:[#allocation10 + $0x28] sm:$0xf]
    %v1459 = vld [vmem:[#allocation10 + $0x2c] sm:$0xf]
    %v1460 = vld [vmem:[#allocation10 + $0x30] sm:$0xf]
    %v1461 = vld [vmem:[#allocation10 + $0x34] sm:$0xf]
    %v1462 = vld [vmem:[#allocation10 + $0x38] sm:$0xf]
    %v1463 = vld [vmem:[#allocation10 + $0x3c] sm:$0xf]
    %v1464 = vld [vmem:[%s8] sm:$0x1]
    %v1466 = vlaneseq
    %v1467 = vshrl.u32 %v1466, 7
    %v1468 = vsub.s32 0, %v1467
    %v1469 = vrot.slane %v1464, %v1468
    %v1487 = vunpack.c.l.b16 %v1448
    %v1488 = vunpack.c.l.b16 %v1449
    %v1489 = vunpack.c.l.b16 %v1450
    %v1490 = vunpack.c.l.b16 %v1451
    %v1491 = vunpack.c.l.b16 %v1452
    %v1492 = vunpack.c.l.b16 %v1453
    %v1493 = vunpack.c.l.b16 %v1454
    %v1494 = vunpack.c.l.b16 %v1455
    %v1495 = vunpack.c.l.b16 %v1456
    %v1496 = vunpack.c.l.b16 %v1457
    %v1497 = vunpack.c.l.b16 %v1458
    %v1498 = vunpack.c.l.b16 %v1459
    %v1499 = vunpack.c.l.b16 %v1460
    %v1500 = vunpack.c.l.b16 %v1461
    %v1501 = vunpack.c.l.b16 %v1462
    %v1502 = vunpack.c.l.b16 %v1463
    %v1503 = vpack.c.b16 %v1488, %v1487
    %v1504 = vpack.c.b16 %v1490, %v1489
    %v1505 = vpack.c.b16 %v1492, %v1491
    %v1506 = vpack.c.b16 %v1494, %v1493
    %v1507 = vpack.c.b16 %v1496, %v1495
    %v1508 = vpack.c.b16 %v1498, %v1497
    %v1509 = vpack.c.b16 %v1500, %v1499
    %v1510 = vpack.c.b16 %v1502, %v1501
    %1519 = vmatprep.subr.bf16.mxu0 0
    %1520 = vmatpush1.bf16.msra.mxu0 %v1510
    %1521 = vmatprep.subr.bf16.mxu0 0
    %1522 = vmatpush1.bf16.msra.mxu0 %v1509
    %1523 = vmatprep.subr.bf16.mxu0 0
    %1524 = vmatpush1.bf16.msra.mxu0 %v1508
    %1525 = vmatprep.subr.bf16.mxu0 0
    %1526 = vmatpush1.bf16.msra.mxu0 %v1507
    %1527 = vmatprep.subr.bf16.mxu0 0
    %1528 = vmatpush1.bf16.msra.mxu0 %v1506
    %1529 = vmatprep.subr.bf16.mxu0 0
    %1530 = vmatpush1.bf16.msra.mxu0 %v1505
    %1531 = vmatprep.subr.bf16.mxu0 0
    %1532 = vmatpush1.bf16.msra.mxu0 %v1504
    %1533 = vmatprep.subr.bf16.mxu0 0
    %1534 = vmatpush1.bf16.msra.mxu0 %v1503
    %1535 = vmatprep.subr.bf16.mxu0 0
    %1536 = vmatpush2.bf16.msra.mxu0 0
    %1537 = vmatprep.subr.bf16.mxu0 0
    %1538 = vmatpush2.bf16.msra.mxu0 0
    %1539 = vmatprep.subr.bf16.mxu0 0
    %1540 = vmatpush2.bf16.msra.mxu0 0
    %1541 = vmatprep.subr.bf16.mxu0 0
    %1542 = vmatpush2.bf16.msra.mxu0 0
    %1543 = vmatprep.subr.bf16.mxu0 0
    %1544 = vmatpush2.bf16.msra.mxu0 0
    %1545 = vmatprep.subr.bf16.mxu0 0
    %1546 = vmatpush2.bf16.msra.mxu0 0
    %1547 = vmatprep.subr.bf16.mxu0 0
    %1548 = vmatpush2.bf16.msra.mxu0 0
    %1549 = vmatprep.subr.bf16.mxu0 0
    %1550 = vmatpush2.bf16.msra.mxu0 0
    %1551 = vmatprep.mubr.bf16.mxu0 0
    %1552 = vmatmul.mubr.bf16.gmra.mxu0 %v1447
    %v1553 = vpop.f32.mrf.mxu0
    %v1554 = vadd.f32 %v1469, %v1553
    %v1555 = vpop.f32.mrf.mxu0
    %v1556 = vpop.f32.mrf.mxu0
    %v1557 = vpop.f32.mrf.mxu0
    %1558 = vdwg.mxu0
    %v1559 = vmax.f32 %v1554, 0.0
    %v1560 = vpack.c.bf16 %v1559, %v1559
    %v1561 = vld [vmem:[#allocation11] sm:$0xf]
    %v1562 = vld [vmem:[#allocation11 + $0x4] sm:$0xf]
    %v1563 = vld [vmem:[#allocation11 + $0x8] sm:$0xf]
    %v1564 = vld [vmem:[#allocation11 + $0xc] sm:$0xf]
    %v1565 = vld [vmem:[#allocation11 + $0x10] sm:$0xf]
    %v1566 = vld [vmem:[#allocation11 + $0x14] sm:$0xf]
    %v1567 = vld [vmem:[#allocation11 + $0x18] sm:$0xf]
    %v1568 = vld [vmem:[#allocation11 + $0x1c] sm:$0xf]
    %v1569 = vld [vmem:[#allocation11 + $0x20] sm:$0xf]
    %v1570 = vld [vmem:[#allocation11 + $0x24] sm:$0xf]
    %v1571 = vld [vmem:[#allocation11 + $0x28] sm:$0xf]
    %v1572 = vld [vmem:[#allocation11 + $0x2c] sm:$0xf]
    %v1573 = vld [vmem:[#allocation11 + $0x30] sm:$0xf]
    %v1574 = vld [vmem:[#allocation11 + $0x34] sm:$0xf]
    %v1575 = vld [vmem:[#allocation11 + $0x38] sm:$0xf]
    %v1576 = vld [vmem:[#allocation11 + $0x3c] sm:$0xf]
    %v1577 = vld [vmem:[%s10] sm:$0x1]
    %v1579 = vlaneseq
    %v1580 = vshrl.u32 %v1579, 7
    %v1581 = vsub.s32 0, %v1580
    %v1582 = vrot.slane %v1577, %v1581
    %v1600 = vunpack.c.l.b16 %v1561
    %v1601 = vunpack.c.l.b16 %v1562
    %v1602 = vunpack.c.l.b16 %v1563
    %v1603 = vunpack.c.l.b16 %v1564
    %v1604 = vunpack.c.l.b16 %v1565
    %v1605 = vunpack.c.l.b16 %v1566
    %v1606 = vunpack.c.l.b16 %v1567
    %v1607 = vunpack.c.l.b16 %v1568
    %v1608 = vunpack.c.l.b16 %v1569
    %v1609 = vunpack.c.l.b16 %v1570
    %v1610 = vunpack.c.l.b16 %v1571
    %v1611 = vunpack.c.l.b16 %v1572
    %v1612 = vunpack.c.l.b16 %v1573
    %v1613 = vunpack.c.l.b16 %v1574
    %v1614 = vunpack.c.l.b16 %v1575
    %v1615 = vunpack.c.l.b16 %v1576
    %v1616 = vpack.c.b16 %v1601, %v1600
    %v1617 = vpack.c.b16 %v1603, %v1602
    %v1618 = vpack.c.b16 %v1605, %v1604
    %v1619 = vpack.c.b16 %v1607, %v1606
    %v1620 = vpack.c.b16 %v1609, %v1608
    %v1621 = vpack.c.b16 %v1611, %v1610
    %v1622 = vpack.c.b16 %v1613, %v1612
    %v1623 = vpack.c.b16 %v1615, %v1614
    %1632 = vmatprep.subr.bf16.mxu0 0
    %1633 = vmatpush1.bf16.msra.mxu0 %v1623
    %1634 = vmatprep.subr.bf16.mxu0 0
    %1635 = vmatpush1.bf16.msra.mxu0 %v1622
    %1636 = vmatprep.subr.bf16.mxu0 0
    %1637 = vmatpush1.bf16.msra.mxu0 %v1621
    %1638 = vmatprep.subr.bf16.mxu0 0
    %1639 = vmatpush1.bf16.msra.mxu0 %v1620
    %1640 = vmatprep.subr.bf16.mxu0 0
    %1641 = vmatpush1.bf16.msra.mxu0 %v1619
    %1642 = vmatprep.subr.bf16.mxu0 0
    %1643 = vmatpush1.bf16.msra.mxu0 %v1618
    %1644 = vmatprep.subr.bf16.mxu0 0
    %1645 = vmatpush1.bf16.msra.mxu0 %v1617
    %1646 = vmatprep.subr.bf16.mxu0 0
    %1647 = vmatpush1.bf16.msra.mxu0 %v1616
    %1648 = vmatprep.subr.bf16.mxu0 0
    %1649 = vmatpush2.bf16.msra.mxu0 0
    %1650 = vmatprep.subr.bf16.mxu0 0
    %1651 = vmatpush2.bf16.msra.mxu0 0
    %1652 = vmatprep.subr.bf16.mxu0 0
    %1653 = vmatpush2.bf16.msra.mxu0 0
    %1654 = vmatprep.subr.bf16.mxu0 0
    %1655 = vmatpush2.bf16.msra.mxu0 0
    %1656 = vmatprep.subr.bf16.mxu0 0
    %1657 = vmatpush2.bf16.msra.mxu0 0
    %1658 = vmatprep.subr.bf16.mxu0 0
    %1659 = vmatpush2.bf16.msra.mxu0 0
    %1660 = vmatprep.subr.bf16.mxu0 0
    %1661 = vmatpush2.bf16.msra.mxu0 0
    %1662 = vmatprep.subr.bf16.mxu0 0
    %1663 = vmatpush2.bf16.msra.mxu0 0
    %1664 = vmatprep.mubr.bf16.mxu0 0
    %1665 = vmatmul.mubr.bf16.gmra.mxu0 %v1560
    %v1666 = vpop.f32.mrf.mxu0
    %v1667 = vadd.f32 %v1582, %v1666
    %v1668 = vpop.f32.mrf.mxu0
    %v1669 = vpop.f32.mrf.mxu0
    %v1670 = vpop.f32.mrf.mxu0
    %1671 = vdwg.mxu0
    %v1672 = vadd.f32 %v1337, %v1667
    %s1673 = scalar_lea.vmem [#allocation14], 2
    %1674 = vst [vmem:[%s1673] sm:$0x3] %v1672
    %s1675 = scalar_lea.vmem [#allocation16], 2
    %1676 = vst [vmem:[%s1675] sm:$0x3] %v1667
    %v1677 = vpack.c.bf16 %v1672, %v1672
    %v1678 = vld [vmem:[#allocation8] sm:$0xf]
    %v1679 = vld [vmem:[#allocation8 + $0x4] sm:$0xf]
    %v1680 = vld [vmem:[#allocation8 + $0x8] sm:$0xf]
    %v1681 = vld [vmem:[#allocation8 + $0xc] sm:$0xf]
    %v1682 = vld [vmem:[#allocation8 + $0x10] sm:$0xf]
    %v1683 = vld [vmem:[#allocation8 + $0x14] sm:$0xf]
    %v1684 = vld [vmem:[#allocation8 + $0x18] sm:$0xf]
    %v1685 = vld [vmem:[#allocation8 + $0x1c] sm:$0xf]
    %v1686 = vld [vmem:[#allocation8 + $0x20] sm:$0xf]
    %v1687 = vld [vmem:[#allocation8 + $0x24] sm:$0xf]
    %v1688 = vld [vmem:[#allocation8 + $0x28] sm:$0xf]
    %v1689 = vld [vmem:[#allocation8 + $0x2c] sm:$0xf]
    %v1690 = vld [vmem:[#allocation8 + $0x30] sm:$0xf]
    %v1691 = vld [vmem:[#allocation8 + $0x34] sm:$0xf]
    %v1692 = vld [vmem:[#allocation8 + $0x38] sm:$0xf]
    %v1693 = vld [vmem:[#allocation8 + $0x3c] sm:$0xf]
    %v1710 = vunpack.c.l.b16 %v1678
    %v1711 = vunpack.c.l.b16 %v1679
    %v1712 = vunpack.c.l.b16 %v1680
    %v1713 = vunpack.c.l.b16 %v1681
    %v1714 = vunpack.c.l.b16 %v1682
    %v1715 = vunpack.c.l.b16 %v1683
    %v1716 = vunpack.c.l.b16 %v1684
    %v1717 = vunpack.c.l.b16 %v1685
    %v1718 = vunpack.c.l.b16 %v1686
    %v1719 = vunpack.c.l.b16 %v1687
    %v1720 = vunpack.c.l.b16 %v1688
    %v1721 = vunpack.c.l.b16 %v1689
    %v1722 = vunpack.c.l.b16 %v1690
    %v1723 = vunpack.c.l.b16 %v1691
    %v1724 = vunpack.c.l.b16 %v1692
    %v1725 = vunpack.c.l.b16 %v1693
    %v1726 = vpack.c.b16 %v1711, %v1710
    %v1727 = vpack.c.b16 %v1713, %v1712
    %v1728 = vpack.c.b16 %v1715, %v1714
    %v1729 = vpack.c.b16 %v1717, %v1716
    %v1730 = vpack.c.b16 %v1719, %v1718
    %v1731 = vpack.c.b16 %v1721, %v1720
    %v1732 = vpack.c.b16 %v1723, %v1722
    %v1733 = vpack.c.b16 %v1725, %v1724
    %1742 = vmatprep.subr.bf16.mxu0 0
    %1743 = vmatpush1.bf16.msra.mxu0 %v1733
    %1744 = vmatprep.subr.bf16.mxu0 0
    %1745 = vmatpush1.bf16.msra.mxu0 %v1732
    %1746 = vmatprep.subr.bf16.mxu0 0
    %1747 = vmatpush1.bf16.msra.mxu0 %v1731
    %1748 = vmatprep.subr.bf16.mxu0 0
    %1749 = vmatpush1.bf16.msra.mxu0 %v1730
    %1750 = vmatprep.subr.bf16.mxu0 0
    %1751 = vmatpush1.bf16.msra.mxu0 %v1729
    %1752 = vmatprep.subr.bf16.mxu0 0
    %1753 = vmatpush1.bf16.msra.mxu0 %v1728
    %1754 = vmatprep.subr.bf16.mxu0 0
    %1755 = vmatpush1.bf16.msra.mxu0 %v1727
    %1756 = vmatprep.subr.bf16.mxu0 0
    %1757 = vmatpush1.bf16.msra.mxu0 %v1726
    %1758 = vmatprep.subr.bf16.mxu0 0
    %1759 = vmatpush2.bf16.msra.mxu0 0
    %1760 = vmatprep.subr.bf16.mxu0 0
    %1761 = vmatpush2.bf16.msra.mxu0 0
    %1762 = vmatprep.subr.bf16.mxu0 0
    %1763 = vmatpush2.bf16.msra.mxu0 0
    %1764 = vmatprep.subr.bf16.mxu0 0
    %1765 = vmatpush2.bf16.msra.mxu0 0
    %1766 = vmatprep.subr.bf16.mxu0 0
    %1767 = vmatpush2.bf16.msra.mxu0 0
    %1768 = vmatprep.subr.bf16.mxu0 0
    %1769 = vmatpush2.bf16.msra.mxu0 0
    %1770 = vmatprep.subr.bf16.mxu0 0
    %1771 = vmatpush2.bf16.msra.mxu0 0
    %1772 = vmatprep.subr.bf16.mxu0 0
    %1773 = vmatpush2.bf16.msra.mxu0 0
    %1774 = vmatprep.mubr.bf16.mxu0 0
    %1775 = vmatmul.mubr.bf16.gmra.mxu0 %v1677
    %v1776 = vpop.f32.mrf.mxu0
    %v1777 = vadd.f32 0.0, %v1776
    %v1778 = vpop.f32.mrf.mxu0
    %v1779 = vpop.f32.mrf.mxu0
    %v1780 = vpop.f32.mrf.mxu0
    %1781 = vdwg.mxu0
    %v1782 = vadd.f32 %v993, %v1777
    %v1783 = vmax.f32 %v1782, 0.0
    %v1784 = vpack.c.bf16 %v1783, %v1783
    %v1785 = vld [vmem:[#allocation10] sm:$0xf]
    %v1786 = vld [vmem:[#allocation10 + $0x4] sm:$0xf]
    %v1787 = vld [vmem:[#allocation10 + $0x8] sm:$0xf]
    %v1788 = vld [vmem:[#allocation10 + $0xc] sm:$0xf]
    %v1789 = vld [vmem:[#allocation10 + $0x10] sm:$0xf]
    %v1790 = vld [vmem:[#allocation10 + $0x14] sm:$0xf]
    %v1791 = vld [vmem:[#allocation10 + $0x18] sm:$0xf]
    %v1792 = vld [vmem:[#allocation10 + $0x1c] sm:$0xf]
    %v1793 = vld [vmem:[#allocation10 + $0x20] sm:$0xf]
    %v1794 = vld [vmem:[#allocation10 + $0x24] sm:$0xf]
    %v1795 = vld [vmem:[#allocation10 + $0x28] sm:$0xf]
    %v1796 = vld [vmem:[#allocation10 + $0x2c] sm:$0xf]
    %v1797 = vld [vmem:[#allocation10 + $0x30] sm:$0xf]
    %v1798 = vld [vmem:[#allocation10 + $0x34] sm:$0xf]
    %v1799 = vld [vmem:[#allocation10 + $0x38] sm:$0xf]
    %v1800 = vld [vmem:[#allocation10 + $0x3c] sm:$0xf]
    %v1801 = vld [vmem:[%s8] sm:$0x1]
    %v1803 = vlaneseq
    %v1804 = vshrl.u32 %v1803, 7
    %v1805 = vsub.s32 0, %v1804
    %v1806 = vrot.slane %v1801, %v1805
    %v1824 = vunpack.c.l.b16 %v1785
    %v1825 = vunpack.c.l.b16 %v1786
    %v1826 = vunpack.c.l.b16 %v1787
    %v1827 = vunpack.c.l.b16 %v1788
    %v1828 = vunpack.c.l.b16 %v1789
    %v1829 = vunpack.c.l.b16 %v1790
    %v1830 = vunpack.c.l.b16 %v1791
    %v1831 = vunpack.c.l.b16 %v1792
    %v1832 = vunpack.c.l.b16 %v1793
    %v1833 = vunpack.c.l.b16 %v1794
    %v1834 = vunpack.c.l.b16 %v1795
    %v1835 = vunpack.c.l.b16 %v1796
    %v1836 = vunpack.c.l.b16 %v1797
    %v1837 = vunpack.c.l.b16 %v1798
    %v1838 = vunpack.c.l.b16 %v1799
    %v1839 = vunpack.c.l.b16 %v1800
    %v1840 = vpack.c.b16 %v1825, %v1824
    %v1841 = vpack.c.b16 %v1827, %v1826
    %v1842 = vpack.c.b16 %v1829, %v1828
    %v1843 = vpack.c.b16 %v1831, %v1830
    %v1844 = vpack.c.b16 %v1833, %v1832
    %v1845 = vpack.c.b16 %v1835, %v1834
    %v1846 = vpack.c.b16 %v1837, %v1836
    %v1847 = vpack.c.b16 %v1839, %v1838
    %1856 = vmatprep.subr.bf16.mxu0 0
    %1857 = vmatpush1.bf16.msra.mxu0 %v1847
    %1858 = vmatprep.subr.bf16.mxu0 0
    %1859 = vmatpush1.bf16.msra.mxu0 %v1846
    %1860 = vmatprep.subr.bf16.mxu0 0
    %1861 = vmatpush1.bf16.msra.mxu0 %v1845
    %1862 = vmatprep.subr.bf16.mxu0 0
    %1863 = vmatpush1.bf16.msra.mxu0 %v1844
    %1864 = vmatprep.subr.bf16.mxu0 0
    %1865 = vmatpush1.bf16.msra.mxu0 %v1843
    %1866 = vmatprep.subr.bf16.mxu0 0
    %1867 = vmatpush1.bf16.msra.mxu0 %v1842
    %1868 = vmatprep.subr.bf16.mxu0 0
    %1869 = vmatpush1.bf16.msra.mxu0 %v1841
    %1870 = vmatprep.subr.bf16.mxu0 0
    %1871 = vmatpush1.bf16.msra.mxu0 %v1840
    %1872 = vmatprep.subr.bf16.mxu0 0
    %1873 = vmatpush2.bf16.msra.mxu0 0
    %1874 = vmatprep.subr.bf16.mxu0 0
    %1875 = vmatpush2.bf16.msra.mxu0 0
    %1876 = vmatprep.subr.bf16.mxu0 0
    %1877 = vmatpush2.bf16.msra.mxu0 0
    %1878 = vmatprep.subr.bf16.mxu0 0
    %1879 = vmatpush2.bf16.msra.mxu0 0
    %1880 = vmatprep.subr.bf16.mxu0 0
    %1881 = vmatpush2.bf16.msra.mxu0 0
    %1882 = vmatprep.subr.bf16.mxu0 0
    %1883 = vmatpush2.bf16.msra.mxu0 0
    %1884 = vmatprep.subr.bf16.mxu0 0
    %1885 = vmatpush2.bf16.msra.mxu0 0
    %1886 = vmatprep.subr.bf16.mxu0 0
    %1887 = vmatpush2.bf16.msra.mxu0 0
    %1888 = vmatprep.mubr.bf16.mxu0 0
    %1889 = vmatmul.mubr.bf16.gmra.mxu0 %v1784
    %v1890 = vpop.f32.mrf.mxu0
    %v1891 = vadd.f32 %v1806, %v1890
    %v1892 = vpop.f32.mrf.mxu0
    %v1893 = vpop.f32.mrf.mxu0
    %v1894 = vpop.f32.mrf.mxu0
    %1895 = vdwg.mxu0
    %v1896 = vmax.f32 %v1891, 0.0
    %v1897 = vpack.c.bf16 %v1896, %v1896
    %v1898 = vld [vmem:[#allocation11] sm:$0xf]
    %v1899 = vld [vmem:[#allocation11 + $0x4] sm:$0xf]
    %v1900 = vld [vmem:[#allocation11 + $0x8] sm:$0xf]
    %v1901 = vld [vmem:[#allocation11 + $0xc] sm:$0xf]
    %v1902 = vld [vmem:[#allocation11 + $0x10] sm:$0xf]
    %v1903 = vld [vmem:[#allocation11 + $0x14] sm:$0xf]
    %v1904 = vld [vmem:[#allocation11 + $0x18] sm:$0xf]
    %v1905 = vld [vmem:[#allocation11 + $0x1c] sm:$0xf]
    %v1906 = vld [vmem:[#allocation11 + $0x20] sm:$0xf]
    %v1907 = vld [vmem:[#allocation11 + $0x24] sm:$0xf]
    %v1908 = vld [vmem:[#allocation11 + $0x28] sm:$0xf]
    %v1909 = vld [vmem:[#allocation11 + $0x2c] sm:$0xf]
    %v1910 = vld [vmem:[#allocation11 + $0x30] sm:$0xf]
    %v1911 = vld [vmem:[#allocation11 + $0x34] sm:$0xf]
    %v1912 = vld [vmem:[#allocation11 + $0x38] sm:$0xf]
    %v1913 = vld [vmem:[#allocation11 + $0x3c] sm:$0xf]
    %v1914 = vld [vmem:[%s10] sm:$0x1]
    %v1916 = vlaneseq
    %v1917 = vshrl.u32 %v1916, 7
    %v1918 = vsub.s32 0, %v1917
    %v1919 = vrot.slane %v1914, %v1918
    %v1937 = vunpack.c.l.b16 %v1898
    %v1938 = vunpack.c.l.b16 %v1899
    %v1939 = vunpack.c.l.b16 %v1900
    %v1940 = vunpack.c.l.b16 %v1901
    %v1941 = vunpack.c.l.b16 %v1902
    %v1942 = vunpack.c.l.b16 %v1903
    %v1943 = vunpack.c.l.b16 %v1904
    %v1944 = vunpack.c.l.b16 %v1905
    %v1945 = vunpack.c.l.b16 %v1906
    %v1946 = vunpack.c.l.b16 %v1907
    %v1947 = vunpack.c.l.b16 %v1908
    %v1948 = vunpack.c.l.b16 %v1909
    %v1949 = vunpack.c.l.b16 %v1910
    %v1950 = vunpack.c.l.b16 %v1911
    %v1951 = vunpack.c.l.b16 %v1912
    %v1952 = vunpack.c.l.b16 %v1913
    %v1953 = vpack.c.b16 %v1938, %v1937
    %v1954 = vpack.c.b16 %v1940, %v1939
    %v1955 = vpack.c.b16 %v1942, %v1941
    %v1956 = vpack.c.b16 %v1944, %v1943
    %v1957 = vpack.c.b16 %v1946, %v1945
    %v1958 = vpack.c.b16 %v1948, %v1947
    %v1959 = vpack.c.b16 %v1950, %v1949
    %v1960 = vpack.c.b16 %v1952, %v1951
    %1969 = vmatprep.subr.bf16.mxu0 0
    %1970 = vmatpush1.bf16.msra.mxu0 %v1960
    %1971 = vmatprep.subr.bf16.mxu0 0
    %1972 = vmatpush1.bf16.msra.mxu0 %v1959
    %1973 = vmatprep.subr.bf16.mxu0 0
    %1974 = vmatpush1.bf16.msra.mxu0 %v1958
    %1975 = vmatprep.subr.bf16.mxu0 0
    %1976 = vmatpush1.bf16.msra.mxu0 %v1957
    %1977 = vmatprep.subr.bf16.mxu0 0
    %1978 = vmatpush1.bf16.msra.mxu0 %v1956
    %1979 = vmatprep.subr.bf16.mxu0 0
    %1980 = vmatpush1.bf16.msra.mxu0 %v1955
    %1981 = vmatprep.subr.bf16.mxu0 0
    %1982 = vmatpush1.bf16.msra.mxu0 %v1954
    %1983 = vmatprep.subr.bf16.mxu0 0
    %1984 = vmatpush1.bf16.msra.mxu0 %v1953
    %1985 = vmatprep.subr.bf16.mxu0 0
    %1986 = vmatpush2.bf16.msra.mxu0 0
    %1987 = vmatprep.subr.bf16.mxu0 0
    %1988 = vmatpush2.bf16.msra.mxu0 0
    %1989 = vmatprep.subr.bf16.mxu0 0
    %1990 = vmatpush2.bf16.msra.mxu0 0
    %1991 = vmatprep.subr.bf16.mxu0 0
    %1992 = vmatpush2.bf16.msra.mxu0 0
    %1993 = vmatprep.subr.bf16.mxu0 0
    %1994 = vmatpush2.bf16.msra.mxu0 0
    %1995 = vmatprep.subr.bf16.mxu0 0
    %1996 = vmatpush2.bf16.msra.mxu0 0
    %1997 = vmatprep.subr.bf16.mxu0 0
    %1998 = vmatpush2.bf16.msra.mxu0 0
    %1999 = vmatprep.subr.bf16.mxu0 0
    %2000 = vmatpush2.bf16.msra.mxu0 0
    %2001 = vmatprep.mubr.bf16.mxu0 0
    %2002 = vmatmul.mubr.bf16.gmra.mxu0 %v1897
    %v2003 = vpop.f32.mrf.mxu0
    %v2004 = vadd.f32 %v1919, %v2003
    %v2005 = vpop.f32.mrf.mxu0
    %v2006 = vpop.f32.mrf.mxu0
    %v2007 = vpop.f32.mrf.mxu0
    %2008 = vdwg.mxu0
    %v2009 = vadd.f32 %v1672, %v2004
    %s2010 = scalar_lea.vmem [#allocation14], 4
    %2011 = vst [vmem:[%s2010] sm:$0x3] %v2009
    %s2012 = scalar_lea.vmem [#allocation16], 4
    %2013 = vst [vmem:[%s2012] sm:$0x3] %v2004
    // Predicated region
    $region70: #{tpu_custom_call.1} parent=1 // pred_check
      _
    $region71: #{tpu_custom_call.1} parent=1 // pred_check_branch
      %2015 = sbr.rel (0) target = $region73
    $region72: #{tpu_custom_call.1} parent=1 // pred_region
      %s2017 = ssub.s32 32, 32
      %2018 = vsyncadd [#allocation4], %s2017
      %s2020 = sshll.u32 [#allocation13], 4
      %s2021 = int_to_ptr.vmem [resolvable:$true] %s2020
      %2023 = dma.vmem_to_hbm [thread:$0]  %s2021, 32, %s11, [#allocation4]
    $region73: #{tpu_custom_call.1} parent=1 // pred_fallthru
      _
    // Predicated region
    $region74: #{tpu_custom_call.1} parent=1 // pred_check
      _
    $region75: #{tpu_custom_call.1} parent=1 // pred_check_branch
      %2025 = sbr.rel (0) target = $region77
    $region76: #{tpu_custom_call.1} parent=1 // pred_region
      %s2027 = ssub.s32 96, 96
      %2028 = vsyncadd [#allocation15], %s2027
      %s2029 = sshll.u32 [#allocation14], 4
      %s2030 = int_to_ptr.vmem [resolvable:$true] %s2029
      %2035 = dma.vmem_to_hbm [thread:$0]  %s2030, 96, %s12, [#allocation15], 32, 32, 2
    $region77: #{tpu_custom_call.1} parent=1 // pred_fallthru
      _
    // Predicated region
    $region78: #{tpu_custom_call.1} parent=1 // pred_check
      _
    $region79: #{tpu_custom_call.1} parent=1 // pred_check_branch
      %2037 = sbr.rel (0) target = $region81
    $region80: #{tpu_custom_call.1} parent=1 // pred_region
      %s2039 = ssub.s32 96, 96
      %2040 = vsyncadd [#allocation15], %s2039
      %s2041 = sshll.u32 [#allocation16], 4
      %s2042 = int_to_ptr.vmem [resolvable:$true] %s2041
      %2047 = dma.vmem_to_hbm [thread:$0]  %s2042, 96, %s13, [#allocation15], 32, 32, 2
    $region81: #{tpu_custom_call.1} parent=1 // pred_fallthru
      _
    // Predicated region
    $region82: #{tpu_custom_call.1} parent=1 // pred_check
      _
    $region83: #{tpu_custom_call.1} parent=1 // pred_check_branch
      %2049 = sbr.rel (0) target = $region85
    $region84: #{tpu_custom_call.1} parent=1 // pred_region
      %2050 = dma.done [#allocation4], 32
    $region85: #{tpu_custom_call.1} parent=1 // pred_fallthru
      _
    // Predicated region
    $region86: #{tpu_custom_call.1} parent=1 // pred_check
      _
    $region87: #{tpu_custom_call.1} parent=1 // pred_check_branch
      %2052 = sbr.rel (0) target = $region89
    $region88: #{tpu_custom_call.1} parent=1 // pred_region
      %2053 = dma.done [#allocation15], 96
    $region89: #{tpu_custom_call.1} parent=1 // pred_fallthru
      _
    // Predicated region
    $region90: #{tpu_custom_call.1} parent=1 // pred_check
      _
    $region91: #{tpu_custom_call.1} parent=1 // pred_check_branch
      %2055 = sbr.rel (0) target = $region93
    $region92: #{tpu_custom_call.1} parent=1 // pred_region
      %2056 = dma.done [#allocation15], 96
    $region93: #{tpu_custom_call.1} parent=1 // pred_fallthru
      _
    %2057 = vsyncpa [#allocation3], 1
    %2058 = vsyncpa [#allocation6], 1
    %2059 = vsyncpa [#allocation9], 1
    %2060 = vsyncpa [#allocation12], 1
    %2061 = vsyncpa [#allocation4], 1
    %2062 = vsyncpa [#allocation15], 1

</llo_original>
